<compile_context>
chip_gen: v5e
topology: v5e:2x2
jax: 0.10.0
libtpu: 0.0.40
codegen_flags: <defaults>
</compile_context>

<pallas_src>
import functools

import jax
import jax.numpy as jnp
from jax.experimental import pallas as pl
from jax.experimental.pallas import tpu as pltpu


MAX_TILE_M = 512                     # max rows (spatial positions) per tile


def _round_up(x, m):
    return ((x + m - 1) // m) * m


def _vmem_limit_bytes():
    # v5e/v6e: 128 MiB physical VMEM -> allow a 64 MiB scoped budget.
    # v7x: only 64 MiB physical -> stay at 32 MiB so double-buffering fits.
    try:
        cap = int(getattr(pltpu.get_tpu_info(), "vmem_capacity_bytes", 0))
        if cap >= 96 * 1024 * 1024:
            return 64 * 1024 * 1024
    except Exception:
        pass
    return 32 * 1024 * 1024


VMEM_LIMIT = _vmem_limit_bytes()


def _choose_m_tiling(m, max_tile=MAX_TILE_M):
    """Pick (tile_m, m_padded): tile_m a multiple of 16 (bf16 sublane pair),
    m_padded a multiple of tile_m with minimal zero padding, and >=2 grid
    steps when possible so the 'parallel' M axis can use both v7x cores."""
    m16 = _round_up(max(m, 16), 16)
    if m16 <= 2 * max_tile:
        tile = _round_up(pl.cdiv(m16, 2), 16) if m16 > 16 else 16
    else:
        tile = max_tile
    return tile, _round_up(m16, tile)


def _plan_k(k_raw, tile_m, cpad):
    """Return (Kpad, tile_k).  tile_k=None means a single K block (weights
    resident in VMEM, no accumulator scratch); otherwise 256-aligned tiles."""
    kpad = _round_up(k_raw, 128)
    need = (2 * tile_m * kpad * 2        # double-buffered bf16 A tiles
            + kpad * cpad * 2            # resident bf16 weights
            + 2 * tile_m * cpad * 2      # double-buffered bf16 output tiles
            + tile_m * cpad * 4)         # f32 dot result
    if need <= int(VMEM_LIMIT * 0.75):
        return kpad, None
    kpad = _round_up(k_raw, 256)         # 256-wide K steps for v6e/v7x MXU
    return kpad, (512 if kpad % 512 == 0 else 256)


def _pad2(a, rows, cols):
    return jnp.pad(a, ((0, rows - a.shape[0]), (0, cols - a.shape[1])))


def _pad1(v, n):
    return jnp.pad(v.astype(jnp.float32), (0, n - v.shape[0]))


# ---------------------------------------------------------------------------
# Pallas kernels
# ---------------------------------------------------------------------------
def conv_stats_single_k_kernel(a_ref, b_ref, o_ref, stats_ref):
    """Single-K-block matmul: bf16 in, f32 MXU accumulation, bf16 out, plus
    per-tile BN partial statistics taken from f32 before the cast."""
    y = jnp.dot(a_ref[...], b_ref[...], preferred_element_type=jnp.float32)
    s1 = jnp.sum(y, axis=0, keepdims=True)          # (1, Cpad)
    s2 = jnp.sum(y * y, axis=0, keepdims=True)      # (1, Cpad)
    stats_ref[:, 0:1, :] = s1[None]
    stats_ref[:, 1:2, :] = s2[None]
    o_ref[...] = y.astype(o_ref.dtype)


def conv_stats_ktiled_kernel(a_ref, b_ref, o_ref, stats_ref, acc_ref):
    """K-tiled fallback for K too large for a single resident block."""
    k = pl.program_id(1)

    @pl.when(k == 0)
    def _():
        acc_ref[...] = jnp.zeros_like(acc_ref)

    acc_ref[...] += jnp.dot(a_ref[...], b_ref[...],
                            preferred_element_type=jnp.float32)

    @pl.when(k == pl.num_programs(1) - 1)
    def _():
        y = acc_ref[...]
        stats_ref[:, 0:1, :] = jnp.sum(y, axis=0, keepdims=True)[None]
        stats_ref[:, 1:2, :] = jnp.sum(y * y, axis=0, keepdims=True)[None]
        o_ref[...] = y.astype(o_ref.dtype)


def normalize_kernel(*refs, has_residual, apply_relu):
    """out = [relu](y*scale + shift [+ res*rscale + rshift]); f32 math,
    bf16/f32 output as requested."""
    if has_residual:
        y_ref, sc_ref, sh_ref, r_ref, rsc_ref, rsh_ref, o_ref = refs
    else:
        y_ref, sc_ref, sh_ref, o_ref = refs
    out = y_ref[...].astype(jnp.float32) * sc_ref[...] + sh_ref[...]
    if has_residual:
        out = out + r_ref[...].astype(jnp.float32) * rsc_ref[...] + rsh_ref[...]
    if apply_relu:
        out = jnp.maximum(out, 0.0)
    o_ref[...] = out.astype(o_ref.dtype)


# ---------------------------------------------------------------------------
# pallas_call wrappers
# ---------------------------------------------------------------------------
def conv_matmul_stats(a_pad, w_pad, tile_m, tile_k=None):
    """a_pad: (Mpad, Kpad) bf16, w_pad: (Kpad, Cpad) bf16
       -> y (Mpad, Cpad) bf16, stats (m_tiles, 2, Cpad) f32."""
    Mpad, Kpad = a_pad.shape
    _, Cpad = w_pad.shape
    m_tiles = Mpad // tile_m
    out_shape = (jax.ShapeDtypeStruct((Mpad, Cpad), jnp.bfloat16),
                 jax.ShapeDtypeStruct((m_tiles, 2, Cpad), jnp.float32))

    if tile_k is None:
        # Single K block: constant weight block index -> B DMA'd once,
        # no accumulator scratch, one grid step per M tile.
        return pl.pallas_call(
            conv_stats_single_k_kernel,
            out_shape=out_shape,
            grid=(m_tiles,),
            in_specs=[pl.BlockSpec((tile_m, Kpad), lambda i: (i, 0)),
                      pl.BlockSpec((Kpad, Cpad), lambda i: (0, 0))],
            out_specs=[pl.BlockSpec((tile_m, Cpad), lambda i: (i, 0)),
                       pl.BlockSpec((1, 2, Cpad), lambda i: (i, 0, 0))],
            compiler_params=pltpu.CompilerParams(
                dimension_semantics=("parallel",),
                vmem_limit_bytes=VMEM_LIMIT),
        )(a_pad, w_pad)

    k_tiles = Kpad // tile_k
    return pl.pallas_call(
        conv_stats_ktiled_kernel,
        out_shape=out_shape,
        grid=(m_tiles, k_tiles),
        in_specs=[pl.BlockSpec((tile_m, tile_k), lambda i, k: (i, k)),
                  pl.BlockSpec((tile_k, Cpad), lambda i, k: (k, 0))],
        out_specs=[pl.BlockSpec((tile_m, Cpad), lambda i, k: (i, 0)),
                   pl.BlockSpec((1, 2, Cpad), lambda i, k: (i, 0, 0))],
        scratch_shapes=[pltpu.VMEM((tile_m, Cpad), jnp.float32)],
        compiler_params=pltpu.CompilerParams(
            dimension_semantics=("parallel", "arbitrary"),
            vmem_limit_bytes=VMEM_LIMIT),
    )(a_pad, w_pad)


def normalize(y_pad, scale, shift, tile_m, residual=None, rscale=None,
              rshift=None, apply_relu=True, out_dtype=jnp.bfloat16):
    Mpad, Cpad = y_pad.shape
    grid = (Mpad // tile_m,)
    inputs = [y_pad, scale.reshape(1, Cpad), shift.reshape(1, Cpad)]
    in_specs = [pl.BlockSpec((tile_m, Cpad), lambda i: (i, 0)),
                pl.BlockSpec((1, Cpad), lambda i: (0, 0)),
                pl.BlockSpec((1, Cpad), lambda i: (0, 0))]
    if residual is not None:
        inputs += [residual, rscale.reshape(1, Cpad), rshift.reshape(1, Cpad)]
        in_specs += [pl.BlockSpec((tile_m, Cpad), lambda i: (i, 0)),
                     pl.BlockSpec((1, Cpad), lambda i: (0, 0)),
                     pl.BlockSpec((1, Cpad), lambda i: (0, 0))]
    kern = functools.partial(normalize_kernel,
                             has_residual=residual is not None,
                             apply_relu=apply_relu)
    return pl.pallas_call(
        kern,
        out_shape=jax.ShapeDtypeStruct((Mpad, Cpad), out_dtype),
        grid=grid,
        in_specs=in_specs,
        out_specs=pl.BlockSpec((tile_m, Cpad), lambda i: (i, 0)),
        compiler_params=pltpu.CompilerParams(
            dimension_semantics=("parallel",),
            vmem_limit_bytes=VMEM_LIMIT),
    )(*inputs)


# ---------------------------------------------------------------------------
# Glue (plain JAX): layout conversion, im2col, parameter prep, BN fold
# ---------------------------------------------------------------------------
def im2col(x_nhwc, kh, kw, stride, pad):
    N, H, W, C = x_nhwc.shape
    xp = jnp.pad(x_nhwc, ((0, 0), (pad, pad), (pad, pad), (0, 0)))
    Ho = (H + 2 * pad - kh) // stride + 1
    Wo = (W + 2 * pad - kw) // stride + 1
    cols = []
    for i in range(kh):
        for j in range(kw):
            cols.append(xp[:, i:i + stride * Ho:stride,
                           j:j + stride * Wo:stride, :])
    patches = jnp.concatenate(cols, axis=-1)          # (N, Ho, Wo, kh*kw*C)
    return patches.reshape(N * Ho * Wo, kh * kw * C)


def weight_to_mat(w_oihw, cin_pad=None):
    # (Cout, Cin, kh, kw) -> (kh*kw*cin_pad, Cout), matching im2col ordering,
    # with zero rows for padded input channels.
    cout, cin, kh, kw = w_oihw.shape
    w = jnp.transpose(w_oihw, (2, 3, 1, 0))           # (kh, kw, cin, cout)
    if cin_pad is not None and cin_pad > cin:
        w = jnp.pad(w, ((0, 0), (0, 0), (0, cin_pad - cin), (0, 0)))
    return w.reshape(-1, cout)


def bn_scale_shift(stats, m_true, gamma_pad, beta_pad, eps):
    # Train-mode BatchNorm (biased batch variance) folded into scale/shift.
    # Partial (sum, sum_sq) per M tile were accumulated in f32; padded
    # rows/channels contributed exact zeros and we divide by the true M.
    # TODO(synk): E[x^2]-mean^2 loses digits for very large mean/M ratios;
    # a centered second pass would tighten it if ever needed.
    s = jnp.sum(stats, axis=0)                        # (2, Cpad)
    mean = s[0] / m_true
    var = jnp.maximum(s[1] / m_true - mean * mean, 0.0)
    scale = gamma_pad * jax.lax.rsqrt(var + eps)
    shift = beta_pad - mean * scale
    return scale, shift


@functools.partial(jax.jit, static_argnums=(2,))
def basic_block_forward(x_nchw, params, stride, eps=1e-5):
    x = jnp.transpose(x_nchw, (0, 2, 3, 1))                       # NHWC f32
    N, H, W, cin = x.shape
    planes = params['conv1'].shape[0]
    Ho = (H - 1) // stride + 1
    Wo = (W - 1) // stride + 1
    M = N * Ho * Wo
    tile_m, Mpad = _choose_m_tiling(M)
    Cpad = _round_up(planes, 128)       # lane-dense output (full-width vst)
    x_bf = x.astype(jnp.bfloat16)       # bf16 activations for MXU + HBM

    def run_conv(patches_bf, w_oihw, cin_pad, gamma, beta):
        K = patches_bf.shape[1]
        kpad, tile_k = _plan_k(K, tile_m, Cpad)
        a = _pad2(patches_bf, Mpad, kpad)
        w = _pad2(weight_to_mat(w_oihw, cin_pad), kpad,
                  Cpad).astype(jnp.bfloat16)
        y, st = conv_matmul_stats(a, w, tile_m, tile_k)
        sc, sh = bn_scale_shift(st, M, _pad1(gamma, Cpad),
                                _pad1(beta, Cpad), eps)
        return y, sc, sh

    # conv1 (3x3, stride, pad=1) + bn1 + relu
    p1 = im2col(x_bf, 3, 3, stride, 1)                 # (M, 9*cin) bf16
    y1, sc1, sh1 = run_conv(p1, params['conv1'], None,
                            params['bn1_gamma'], params['bn1_beta'])
    h1 = normalize(y1, sc1, sh1, tile_m, apply_relu=True)   # (Mpad, Cpad) bf16

    # conv2 (3x3, stride=1, pad=1): h1 feeds straight back in bf16.  When the
    # channel count is already lane-aligned (planes == Cpad) the padded layout
    # goes through im2col untouched (matching weight rows are zero), removing
    # the slice/re-pad/cast passes the review flagged.
    if Mpad > M:
        h1 = h1[:M]
    if planes == Cpad:
        h1_nhwc = h1.reshape(N, Ho, Wo, Cpad)
        cin_pad2 = Cpad
    else:
        h1_nhwc = h1[:, :planes].reshape(N, Ho, Wo, planes)
        cin_pad2 = None
    p2 = im2col(h1_nhwc, 3, 3, 1, 1)                   # bf16 patches
    y2, sc2, sh2 = run_conv(p2, params['conv2'], cin_pad2,
                            params['bn2_gamma'], params['bn2_beta'])

    # shortcut: projection (1x1 conv; its BN fused into the final kernel)
    # or identity
    if stride != 1 or cin != planes:
        ps = x_bf[:, ::stride, ::stride, :].reshape(M, cin)   # 1x1: no im2col
        res, rsc, rsh = run_conv(ps, params['conv_sc'], None,
                                 params['bn_sc_gamma'], params['bn_sc_beta'])
    else:
        res = _pad2(x_bf.reshape(M, cin), Mpad, Cpad)
        rsc = jnp.ones((Cpad,), jnp.float32)
        rsh = jnp.zeros((Cpad,), jnp.float32)

    # bn2 + (shortcut BN) + residual add + relu, fused; final output in f32
    out = normalize(y2, sc2, sh2, tile_m, residual=res, rscale=rsc,
                    rshift=rsh, apply_relu=True, out_dtype=jnp.float32)
    out = out[:M, :planes].reshape(N, Ho, Wo, planes)
    return jnp.transpose(out, (0, 3, 1, 2))                  # back to NCHW


def init_params(key, in_planes, planes, stride):
    k1, k2, k3 = jax.random.split(key, 3)
    params = {
        'conv1': 0.1 * jax.random.normal(k1, (planes, in_planes, 3, 3),
                                         jnp.float32),
        'bn1_gamma': jnp.ones((planes,), jnp.float32),
        'bn1_beta': jnp.zeros((planes,), jnp.float32),
        'conv2': 0.1 * jax.random.normal(k2, (planes, planes, 3, 3),
                                         jnp.float32),
        'bn2_gamma': jnp.ones((planes,), jnp.float32),
        'bn2_beta': jnp.zeros((planes,), jnp.float32),
    }
    if stride != 1 or in_planes != planes:
        params['conv_sc'] = 0.1 * jax.random.normal(
            k3, (planes, in_planes, 1, 1), jnp.float32)
        params['bn_sc_gamma'] = jnp.ones((planes,), jnp.float32)
        params['bn_sc_beta'] = jnp.zeros((planes,), jnp.float32)
    return params


# ---------------------------------------------------------------------------
# Pure-JAX reference (for a sanity check)
# ---------------------------------------------------------------------------
def ref_forward(x, params, stride, eps=1e-5):
    def conv(x, w, s, p):
        return jax.lax.conv_general_dilated(
            x, w, (s, s), [(p, p), (p, p)],
            dimension_numbers=('NCHW', 'OIHW', 'NCHW'))

    def bn(x, g, b):
        mean = jnp.mean(x, axis=(0, 2, 3), keepdims=True)
        var = jnp.mean((x - mean) ** 2, axis=(0, 2, 3), keepdims=True)
        return ((x - mean) * jax.lax.rsqrt(var + eps)
                * g.reshape(1, -1, 1, 1) + b.reshape(1, -1, 1, 1))

    planes = params['conv1'].shape[0]
    out = jax.nn.relu(bn(conv(x, params['conv1'], stride, 1),
                         params['bn1_gamma'], params['bn1_beta']))
    out = bn(conv(out, params['conv2'], 1, 1),
             params['bn2_gamma'], params['bn2_beta'])
    if stride != 1 or x.shape[1] != planes:
        sc = bn(conv(x, params['conv_sc'], stride, 0),
                params['bn_sc_gamma'], params['bn_sc_beta'])
    else:
        sc = x
    return jax.nn.relu(out + sc)


if __name__ == "__main__":
    key = jax.random.PRNGKey(0)

    configs = [
        # (N, in_planes, planes, H, W, stride)
        (2, 4, 8, 16, 16, 1),    # projection shortcut (channel change)
        (2, 8, 8, 16, 16, 1),    # identity shortcut
        (2, 4, 8, 16, 16, 2),    # projection shortcut with stride 2
    ]
    for idx, (N, cin, planes, H, W, stride) in enumerate(configs):
        k_x, k_p = jax.random.split(jax.random.fold_in(key, idx))
        x = jax.random.normal(k_x, (N, cin, H, W), jnp.float32)
        params = init_params(k_p, cin, planes, stride)

        out = jax.block_until_ready(basic_block_forward(x, params, stride))
        ref = ref_forward(x, params, stride)

        Ho = (H - 1) // stride + 1
        assert out.shape == (N, planes, Ho, Ho), out.shape
        max_diff = float(jnp.max(jnp.abs(out - ref)))
        # bf16 MXU inputs AND bf16 intermediates (y1/h1/y2/residual) vs the
        # pure-f32 reference -> loose absolute tolerance.
        assert max_diff < 2e-1, f"config {idx}: mismatch vs reference {max_diff}"
    print("KERNEL_OK")
</pallas_src>

<mosaic_0001>
module attributes {stable_mosaic.version = 11 : i64} {
  func.func @normalize_kernel(%arg0: i32, %arg1: memref<256x128xbf16, #tpu.memory_space<vmem>>, %arg2: memref<1x128xf32, #tpu.memory_space<vmem>>, %arg3: memref<1x128xf32, #tpu.memory_space<vmem>>, %arg4: memref<256x128xbf16, #tpu.memory_space<vmem>>) attributes {dimension_semantics = [#tpu.dimension_semantics<parallel>], iteration_bounds = array<i64: 2>, scalar_prefetch = 0 : i64, scratch_operands = 0 : i64, tpu.core_type = #tpu.core_type<tc>, window_params = [{transform_indices = @transform_0, window_bounds = array<i64: 256, 128>}, {pipeline_mode = #tpu.pipeline_mode<synchronous>, transform_indices = @transform_1, window_bounds = array<i64: 1, 128>}, {pipeline_mode = #tpu.pipeline_mode<synchronous>, transform_indices = @transform_2, window_bounds = array<i64: 1, 128>}, {transform_indices = @transform_3, window_bounds = array<i64: 256, 128>}]} {
    %c0 = arith.constant 0 : index
    %c0_0 = arith.constant 0 : index
    %0 = vector.load %arg1[%c0, %c0_0] : memref<256x128xbf16, #tpu.memory_space<vmem>>, vector<256x128xbf16>
    %1 = arith.extf %0 : vector<256x128xbf16> to vector<256x128xf32>
    %c0_1 = arith.constant 0 : index
    %c0_2 = arith.constant 0 : index
    %2 = vector.load %arg2[%c0_1, %c0_2] : memref<1x128xf32, #tpu.memory_space<vmem>>, vector<1x128xf32>
    %3 = vector.broadcast %2 : vector<1x128xf32> to vector<256x128xf32>
    %4 = arith.mulf %1, %3 : vector<256x128xf32>
    %c0_3 = arith.constant 0 : index
    %c0_4 = arith.constant 0 : index
    %5 = vector.load %arg3[%c0_3, %c0_4] : memref<1x128xf32, #tpu.memory_space<vmem>>, vector<1x128xf32>
    %6 = vector.broadcast %5 : vector<1x128xf32> to vector<256x128xf32>
    %7 = arith.addf %4, %6 : vector<256x128xf32>
    %cst = arith.constant 0.000000e+00 : f32
    %8 = vector.broadcast %cst : f32 to vector<256x128xf32>
    %9 = arith.maximumf %7, %8 : vector<256x128xf32>
    %10 = arith.truncf %9 : vector<256x128xf32> to vector<256x128xbf16>
    %c0_5 = arith.constant 0 : index
    %c0_6 = arith.constant 0 : index
    %11 = vector.load %arg4[%c0_5, %c0_6] : memref<256x128xbf16, #tpu.memory_space<vmem>>, vector<256x128xbf16>
    tpu.vector_store %arg4[%c0_5, %c0_6], %10 {strides = array<i32>} : memref<256x128xbf16, #tpu.memory_space<vmem>>, vector<256x128xbf16>,
    return
  }
  func.func @transform_0(%arg0: i32) -> (i32, i32) {
    %c0_i32 = arith.constant 0 : i32
    %c0_i32_0 = arith.constant 0 : i32
    return %arg0, %c0_i32 : i32, i32
  }
  func.func @transform_1(%arg0: i32) -> (i32, i32) {
    %c0_i32 = arith.constant 0 : i32
    %c0_i32_0 = arith.constant 0 : i32
    %c0_i32_1 = arith.constant 0 : i32
    return %c0_i32, %c0_i32_0 : i32, i32
  }
  func.func @transform_2(%arg0: i32) -> (i32, i32) {
    %c0_i32 = arith.constant 0 : i32
    %c0_i32_0 = arith.constant 0 : i32
    %c0_i32_1 = arith.constant 0 : i32
    return %c0_i32, %c0_i32_0 : i32, i32
  }
  func.func @transform_3(%arg0: i32) -> (i32, i32) {
    %c0_i32 = arith.constant 0 : i32
    %c0_i32_0 = arith.constant 0 : i32
    return %arg0, %c0_i32 : i32, i32
  }
}

module attributes {stable_mosaic.version = 11 : i64} {
  func.func @conv_stats_single_k_kernel(%arg0: i32, %arg1: memref<256x128xbf16, #tpu.memory_space<vmem>>, %arg2: memref<128x128xbf16, #tpu.memory_space<vmem>>, %arg3: memref<256x128xbf16, #tpu.memory_space<vmem>>, %arg4: memref<1x2x128xf32, #tpu.memory_space<vmem>>) attributes {dimension_semantics = [#tpu.dimension_semantics<parallel>], iteration_bounds = array<i64: 2>, scalar_prefetch = 0 : i64, scratch_operands = 0 : i64, tpu.core_type = #tpu.core_type<tc>, window_params = [{transform_indices = @transform_0, window_bounds = array<i64: 256, 128>}, {pipeline_mode = #tpu.pipeline_mode<synchronous>, transform_indices = @transform_1, window_bounds = array<i64: 128, 128>}, {transform_indices = @transform_2, window_bounds = array<i64: 256, 128>}, {transform_indices = @transform_3, window_bounds = array<i64: 1, 2, 128>}]} {
    %c0 = arith.constant 0 : index
    %c0_0 = arith.constant 0 : index
    %0 = vector.load %arg1[%c0, %c0_0] : memref<256x128xbf16, #tpu.memory_space<vmem>>, vector<256x128xbf16>
    %c0_1 = arith.constant 0 : index
    %c0_2 = arith.constant 0 : index
    %1 = vector.load %arg2[%c0_1, %c0_2] : memref<128x128xbf16, #tpu.memory_space<vmem>>, vector<128x128xbf16>
    %cst = arith.constant dense<0.000000e+00> : vector<256x128xf32>
    %2 = tpu.matmul %0, %1, %cst {dimension_numbers = #tpu.dot_dimension_numbers<[1], [0], [0], [1], [0, 0, 1, 1], [], []>} : vector<256x128xbf16>, vector<128x128xbf16>, vector<256x128xf32> -> vector<256x128xf32>
    %cst_3 = arith.constant dense<0.000000e+00> : vector<128xf32>
    %3 = vector.multi_reduction <add>, %2, %cst_3 [0] : vector<256x128xf32> to vector<128xf32>
    %4 = vector.shape_cast %3 : vector<128xf32> to vector<1x128xf32>
    %5 = arith.mulf %2, %2 : vector<256x128xf32>
    %cst_4 = arith.constant dense<0.000000e+00> : vector<128xf32>
    %6 = vector.multi_reduction <add>, %5, %cst_4 [0] : vector<256x128xf32> to vector<128xf32>
    %7 = vector.shape_cast %6 : vector<128xf32> to vector<1x128xf32>
    %8 = vector.shape_cast %4 : vector<1x128xf32> to vector<1x1x128xf32>
    %c0_5 = arith.constant 0 : index
    %c0_6 = arith.constant 0 : index
    %c0_7 = arith.constant 0 : index
    %9 = vector.load %arg4[%c0_5, %c0_6, %c0_7] : memref<1x2x128xf32, #tpu.memory_space<vmem>>, vector<1x1x128xf32>
    tpu.vector_store %arg4[%c0_5, %c0_6, %c0_7], %8 {strides = array<i32>} : memref<1x2x128xf32, #tpu.memory_space<vmem>>, vector<1x1x128xf32>,
    %10 = vector.shape_cast %7 : vector<1x128xf32> to vector<1x1x128xf32>
    %c0_8 = arith.constant 0 : index
    %c1 = arith.constant 1 : index
    %c0_9 = arith.constant 0 : index
    %11 = vector.load %arg4[%c0_8, %c1, %c0_9] : memref<1x2x128xf32, #tpu.memory_space<vmem>>, vector<1x1x128xf32>
    tpu.vector_store %arg4[%c0_8, %c1, %c0_9], %10 {strides = array<i32>} : memref<1x2x128xf32, #tpu.memory_space<vmem>>, vector<1x1x128xf32>,
    %12 = arith.truncf %2 : vector<256x128xf32> to vector<256x128xbf16>
    %c0_10 = arith.constant 0 : index
    %c0_11 = arith.constant 0 : index
    %13 = vector.load %arg3[%c0_10, %c0_11] : memref<256x128xbf16, #tpu.memory_space<vmem>>, vector<256x128xbf16>
    tpu.vector_store %arg3[%c0_10, %c0_11], %12 {strides = array<i32>} : memref<256x128xbf16, #tpu.memory_space<vmem>>, vector<256x128xbf16>,
    return
  }
  func.func @transform_0(%arg0: i32) -> (i32, i32) {
    %c0_i32 = arith.constant 0 : i32
    %c0_i32_0 = arith.constant 0 : i32
    return %arg0, %c0_i32 : i32, i32
  }
  func.func @transform_1(%arg0: i32) -> (i32, i32) {
    %c0_i32 = arith.constant 0 : i32
    %c0_i32_0 = arith.constant 0 : i32
    %c0_i32_1 = arith.constant 0 : i32
    return %c0_i32, %c0_i32_0 : i32, i32
  }
  func.func @transform_2(%arg0: i32) -> (i32, i32) {
    %c0_i32 = arith.constant 0 : i32
    %c0_i32_0 = arith.constant 0 : i32
    return %arg0, %c0_i32 : i32, i32
  }
  func.func @transform_3(%arg0: i32) -> (i32, i32, i32) {
    %c0_i32 = arith.constant 0 : i32
    %c0_i32_0 = arith.constant 0 : i32
    %c0_i32_1 = arith.constant 0 : i32
    return %arg0, %c0_i32, %c0_i32_0 : i32, i32, i32
  }
}

module attributes {stable_mosaic.version = 11 : i64} {
  func.func @normalize_kernel(%arg0: i32, %arg1: memref<256x128xbf16, #tpu.memory_space<vmem>>, %arg2: memref<1x128xf32, #tpu.memory_space<vmem>>, %arg3: memref<1x128xf32, #tpu.memory_space<vmem>>, %arg4: memref<256x128xbf16, #tpu.memory_space<vmem>>, %arg5: memref<1x128xf32, #tpu.memory_space<vmem>>, %arg6: memref<1x128xf32, #tpu.memory_space<vmem>>, %arg7: memref<256x128xf32, #tpu.memory_space<vmem>>) attributes {dimension_semantics = [#tpu.dimension_semantics<parallel>], iteration_bounds = array<i64: 2>, scalar_prefetch = 0 : i64, scratch_operands = 0 : i64, tpu.core_type = #tpu.core_type<tc>, window_params = [{transform_indices = @transform_0, window_bounds = array<i64: 256, 128>}, {pipeline_mode = #tpu.pipeline_mode<synchronous>, transform_indices = @transform_1, window_bounds = array<i64: 1, 128>}, {pipeline_mode = #tpu.pipeline_mode<synchronous>, transform_indices = @transform_2, window_bounds = array<i64: 1, 128>}, {transform_indices = @transform_3, window_bounds = array<i64: 256, 128>}, {pipeline_mode = #tpu.pipeline_mode<synchronous>, transform_indices = @transform_4, window_bounds = array<i64: 1, 128>}, {pipeline_mode = #tpu.pipeline_mode<synchronous>, transform_indices = @transform_5, window_bounds = array<i64: 1, 128>}, {transform_indices = @transform_6, window_bounds = array<i64: 256, 128>}]} {
    %c0 = arith.constant 0 : index
    %c0_0 = arith.constant 0 : index
    %0 = vector.load %arg1[%c0, %c0_0] : memref<256x128xbf16, #tpu.memory_space<vmem>>, vector<256x128xbf16>
    %1 = arith.extf %0 : vector<256x128xbf16> to vector<256x128xf32>
    %c0_1 = arith.constant 0 : index
    %c0_2 = arith.constant 0 : index
    %2 = vector.load %arg2[%c0_1, %c0_2] : memref<1x128xf32, #tpu.memory_space<vmem>>, vector<1x128xf32>
    %3 = vector.broadcast %2 : vector<1x128xf32> to vector<256x128xf32>
    %4 = arith.mulf %1, %3 : vector<256x128xf32>
    %c0_3 = arith.constant 0 : index
    %c0_4 = arith.constant 0 : index
    %5 = vector.load %arg3[%c0_3, %c0_4] : memref<1x128xf32, #tpu.memory_space<vmem>>, vector<1x128xf32>
    %6 = vector.broadcast %5 : vector<1x128xf32> to vector<256x128xf32>
    %7 = arith.addf %4, %6 : vector<256x128xf32>
    %c0_5 = arith.constant 0 : index
    %c0_6 = arith.constant 0 : index
    %8 = vector.load %arg4[%c0_5, %c0_6] : memref<256x128xbf16, #tpu.memory_space<vmem>>, vector<256x128xbf16>
    %9 = arith.extf %8 : vector<256x128xbf16> to vector<256x128xf32>
    %c0_7 = arith.constant 0 : index
    %c0_8 = arith.constant 0 : index
    %10 = vector.load %arg5[%c0_7, %c0_8] : memref<1x128xf32, #tpu.memory_space<vmem>>, vector<1x128xf32>
    %11 = vector.broadcast %10 : vector<1x128xf32> to vector<256x128xf32>
    %12 = arith.mulf %9, %11 : vector<256x128xf32>
    %13 = arith.addf %7, %12 : vector<256x128xf32>
    %c0_9 = arith.constant 0 : index
    %c0_10 = arith.constant 0 : index
    %14 = vector.load %arg6[%c0_9, %c0_10] : memref<1x128xf32, #tpu.memory_space<vmem>>, vector<1x128xf32>
    %15 = vector.broadcast %14 : vector<1x128xf32> to vector<256x128xf32>
    %16 = arith.addf %13, %15 : vector<256x128xf32>
    %cst = arith.constant 0.000000e+00 : f32
    %17 = vector.broadcast %cst : f32 to vector<256x128xf32>
    %18 = arith.maximumf %16, %17 : vector<256x128xf32>
    %c0_11 = arith.constant 0 : index
    %c0_12 = arith.constant 0 : index
    %19 = vector.load %arg7[%c0_11, %c0_12] : memref<256x128xf32, #tpu.memory_space<vmem>>, vector<256x128xf32>
    tpu.vector_store %arg7[%c0_11, %c0_12], %18 {strides = array<i32>} : memref<256x128xf32, #tpu.memory_space<vmem>>, vector<256x128xf32>,
    return
  }
  func.func @transform_0(%arg0: i32) -> (i32, i32) {
    %c0_i32 = arith.constant 0 : i32
    %c0_i32_0 = arith.constant 0 : i32
    return %arg0, %c0_i32 : i32, i32
  }
  func.func @transform_1(%arg0: i32) -> (i32, i32) {
    %c0_i32 = arith.constant 0 : i32
    %c0_i32_0 = arith.constant 0 : i32
    %c0_i32_1 = arith.constant 0 : i32
    return %c0_i32, %c0_i32_0 : i32, i32
  }
  func.func @transform_2(%arg0: i32) -> (i32, i32) {
    %c0_i32 = arith.constant 0 : i32
    %c0_i32_0 = arith.constant 0 : i32
    %c0_i32_1 = arith.constant 0 : i32
    return %c0_i32, %c0_i32_0 : i32, i32
  }
  func.func @transform_3(%arg0: i32) -> (i32, i32) {
    %c0_i32 = arith.constant 0 : i32
    %c0_i32_0 = arith.constant 0 : i32
    return %arg0, %c0_i32 : i32, i32
  }
  func.func @transform_4(%arg0: i32) -> (i32, i32) {
    %c0_i32 = arith.constant 0 : i32
    %c0_i32_0 = arith.constant 0 : i32
    %c0_i32_1 = arith.constant 0 : i32
    return %c0_i32, %c0_i32_0 : i32, i32
  }
  func.func @transform_5(%arg0: i32) -> (i32, i32) {
    %c0_i32 = arith.constant 0 : i32
    %c0_i32_0 = arith.constant 0 : i32
    %c0_i32_1 = arith.constant 0 : i32
    return %c0_i32, %c0_i32_0 : i32, i32
  }
  func.func @transform_6(%arg0: i32) -> (i32, i32) {
    %c0_i32 = arith.constant 0 : i32
    %c0_i32_0 = arith.constant 0 : i32
    return %arg0, %c0_i32 : i32, i32
  }
}

</mosaic_0001>

<llo_original>
// kernel: basic_block_forward.6
$region0: #{basic_block_forward.6}
  #allocation0 [shape = 'u32[]', space=smem, size = 0x4, offset = 0x4, fixed_abs, tag = 'smem constant byte address 0x4 - core index']
  #allocation1 [shape = 'u32[72,128]{1,0:T(1,128)}', space=vmem, size = 0x9000, scoped, tag = 'internal scratch']
  %s0 = inlined_call_operand.vmem [shape: bf16[512,128], index: 0, kind: input, shape index: {}]
  %s1 = inlined_call_operand.vmem [shape: f32[1,128], index: 1, kind: input, shape index: {}]
  %s2 = inlined_call_operand.vmem [shape: f32[1,128], index: 2, kind: input, shape index: {}]
  %s3 = inlined_call_operand.vmem [shape: bf16[512,128], index: 3, kind: output, shape index: {}]
  %s4 = sld [smem:[#allocation0]]
  $region45: #{basic_block_forward.6} parent=0
    _
  %s6 = ssub.s32 1, %s4
  %s7 = scalar_select 0, %s6, %s4
  loop: start=0, step=1, limit=4
  $region2: #{basic_block_forward.6} parent=0 // loop_pre_header
    _
  $region3: #{basic_block_forward.6} parent=0 // loop_header
    %s9 = sphi 0, %s13
    %p10 = scmp.ge.s32.totalorder %s9, 4
    %s19 = sphi 0, %s21
    %s22 = sphi 0, %s19
    %s23 = sphi 0, %s22
    %s39 = sphi 0, %s23
    %s43 = sphi 0, %s43
    %s45 = sphi 0, %s43
    %s46 = sphi 0, %s45
    %s60 = sphi 0, %s46
    %s64 = sphi 0, %s64
    %s66 = sphi 0, %s64
    %s67 = sphi 0, %s66
    %s81 = sphi 0, %s67
    %s87 = sphi 0, %s89
    %s90 = sphi 0, %s87
    %s91 = sphi 0, %s90
    %s107 = sphi 0, %s91
  $region4: #{basic_block_forward.6} parent=0 // loop_header_branch
    %12 = sbr.rel (%p10) target = $region8
  $region5: #{basic_block_forward.6} parent=0 // loop_body
    %s14 = ssub.s32 %s9, 1
    %s15 = ssub.s32 %s9, 2
    %s16 = sadd.s32 %s9, 1
    %s17 = ssub.s32 %s9, %s16
    %p18 = scmp.eq.s32.totalorder %s17, 0
    %s20 = sadd.s32 %s19, 1
    %s21 = scalar_select %p18, %s19, %s20
    %p24 = pneg %p18
    %p25 = scmp.eq.s32.totalorder %s9, 1
    %p26 = por %p24, %p25
    %p27 = scmp.ne.s32.totalorder %s19, %s22
    %p28 = scmp.eq.s32.totalorder %s9, 0
    %p29 = por %p27, %p28
    %p30 = scmp.ne.s32.totalorder %s19, %s22
    %p31 = scmp.eq.s32.totalorder %s14, 1
    %p32 = por %p30, %p31
    %p33 = scmp.ne.s32.totalorder %s22, %s23
    %p34 = scmp.eq.s32.totalorder %s14, 0
    %p35 = por %p33, %p34
    %p36 = scmp.ne.s32.totalorder %s22, %s23
    %p37 = scmp.eq.s32.totalorder %s15, 1
    %p38 = por %p36, %p37
    %p40 = scmp.ne.s32.totalorder %s23, %s39
    %p41 = scmp.eq.s32.totalorder %s15, 0
    %p42 = por %p40, %p41
    %s44 = sadd.s32 %s43, 1
    %p47 = scmp.eq.s32.totalorder %s9, 1
    %p48 = scmp.ne.s32.totalorder %s43, %s45
    %p49 = scmp.eq.s32.totalorder %s9, 0
    %p50 = por %p48, %p49
    %p51 = scmp.ne.s32.totalorder %s43, %s45
    %p52 = scmp.eq.s32.totalorder %s14, 1
    %p53 = por %p51, %p52
    %p54 = scmp.ne.s32.totalorder %s45, %s46
    %p55 = scmp.eq.s32.totalorder %s14, 0
    %p56 = por %p54, %p55
    %p57 = scmp.ne.s32.totalorder %s45, %s46
    %p58 = scmp.eq.s32.totalorder %s15, 1
    %p59 = por %p57, %p58
    %p61 = scmp.ne.s32.totalorder %s46, %s60
    %p62 = scmp.eq.s32.totalorder %s15, 0
    %p63 = por %p61, %p62
    %s65 = sadd.s32 %s64, 1
    %p68 = scmp.eq.s32.totalorder %s9, 1
    %p69 = scmp.ne.s32.totalorder %s64, %s66
    %p70 = scmp.eq.s32.totalorder %s9, 0
    %p71 = por %p69, %p70
    %p72 = scmp.ne.s32.totalorder %s64, %s66
    %p73 = scmp.eq.s32.totalorder %s14, 1
    %p74 = por %p72, %p73
    %p75 = scmp.ne.s32.totalorder %s66, %s67
    %p76 = scmp.eq.s32.totalorder %s14, 0
    %p77 = por %p75, %p76
    %p78 = scmp.ne.s32.totalorder %s66, %s67
    %p79 = scmp.eq.s32.totalorder %s15, 1
    %p80 = por %p78, %p79
    %p82 = scmp.ne.s32.totalorder %s67, %s81
    %p83 = scmp.eq.s32.totalorder %s15, 0
    %p84 = por %p82, %p83
    %s85 = ssub.s32 %s9, %s16
    %p86 = scmp.eq.s32.totalorder %s85, 0
    %s88 = sadd.s32 %s87, 1
    %s89 = scalar_select %p86, %s87, %s88
    %p92 = pneg %p86
    %p93 = scmp.eq.s32.totalorder %s9, 1
    %p94 = por %p92, %p93
    %p95 = scmp.ne.s32.totalorder %s87, %s90
    %p96 = scmp.eq.s32.totalorder %s9, 0
    %p97 = por %p95, %p96
    %p98 = scmp.ne.s32.totalorder %s87, %s90
    %p99 = scmp.eq.s32.totalorder %s14, 1
    %p100 = por %p98, %p99
    %p101 = scmp.ne.s32.totalorder %s90, %s91
    %p102 = scmp.eq.s32.totalorder %s14, 0
    %p103 = por %p101, %p102
    %p104 = scmp.ne.s32.totalorder %s90, %s91
    %p105 = scmp.eq.s32.totalorder %s15, 1
    %p106 = por %p104, %p105
    %p108 = scmp.ne.s32.totalorder %s91, %s107
    %p109 = scmp.eq.s32.totalorder %s15, 0
    %p110 = por %p108, %p109
    %p111 = scmp.le.s32.totalorder 1, %s9
    %p112 = scmp.lt.s32.totalorder %s9, 3
    %p113 = pnand %p111, %p112
    %p114 = pneg %p113
    // Predicated region
    $region9: #{basic_block_forward.6} parent=5 // pred_check
      _
    $region10: #{basic_block_forward.6} parent=5 // pred_check_branch
      %116 = sbr.rel (%p113) target = $region12
    $region11: #{basic_block_forward.6} parent=5 // pred_region
      %s117 = ssub.s32 %s9, 1
      // Predicated region
      $region13: #{basic_block_forward.6} parent=11 // pred_check
        %p118 = pneg %p56
      $region14: #{basic_block_forward.6} parent=11 // pred_check_branch
        %120 = sbr.rel (%p118) target = $region16
      $region15: #{basic_block_forward.6} parent=11 // pred_region
        _
      $region16: #{basic_block_forward.6} parent=11 // pred_fallthru
        _
      // Predicated region
      $region17: #{basic_block_forward.6} parent=11 // pred_check
        %p121 = pneg %p77
      $region18: #{basic_block_forward.6} parent=11 // pred_check_branch
        %123 = sbr.rel (%p121) target = $region20
      $region19: #{basic_block_forward.6} parent=11 // pred_region
        _
      $region20: #{basic_block_forward.6} parent=11 // pred_fallthru
        _
    $region12: #{basic_block_forward.6} parent=5 // pred_fallthru
      _
    %p124 = scmp.lt.s32.totalorder %s9, 2
    // Predicated region
    $region21: #{basic_block_forward.6} parent=5 // pred_check
      %p125 = pneg %p124
    $region22: #{basic_block_forward.6} parent=5 // pred_check_branch
      %127 = sbr.rel (%p125) target = $region24
    $region23: #{basic_block_forward.6} parent=5 // pred_region
      // Predicated region
      $region25: #{basic_block_forward.6} parent=23 // pred_check
        %p128 = pneg %p29
      $region26: #{basic_block_forward.6} parent=23 // pred_check_branch
        %130 = sbr.rel (%p128) target = $region28
      $region27: #{basic_block_forward.6} parent=23 // pred_region
        %s131 = smul.u32 32, %s9
        %p132 = scmp.lt.s32.totalorder %s131, 63
        %s133 = scalar_select %p132, %s131, 63
        %s134 = smul.addr %s133, 4
        %s135 = scalar_lea.vmem %s0, %s134
        %s136 = smul.u32 32, %s9
      $region28: #{basic_block_forward.6} parent=23 // pred_fallthru
        _
    $region24: #{basic_block_forward.6} parent=5 // pred_fallthru
      _
    %p137 = scmp.le.s32.totalorder 1, %s9
    %p138 = scmp.lt.s32.totalorder %s9, 3
    %p139 = pnand %p137, %p138
    %p140 = pneg %p139
    // Predicated region
    $region29: #{basic_block_forward.6} parent=5 // pred_check
      _
    $region30: #{basic_block_forward.6} parent=5 // pred_check_branch
      %142 = sbr.rel (%p139) target = $region32
    $region31: #{basic_block_forward.6} parent=5 // pred_region
      %s143 = ssub.s32 %s9, 1
      %s144 = smul.u32 32, %s14
      %p145 = scmp.lt.s32.totalorder %s144, 63
      %s146 = scalar_select %p145, %s144, 63
      %s147 = smul.addr %s146, 4
      %s148 = scalar_lea.vmem %s0, %s147
      %p149 = pneg %p35
      %p150 = pneg %p32
      %p151 = pneg %p56
      %p152 = pneg %p53
      %p153 = pneg %p77
      %p154 = pneg %p74
      %p155 = pneg %p103
      %p156 = pneg %p100
      %s157 = smul.u32 32, %s14
      %p158 = scmp.lt.s32.totalorder %s157, 63
      %s159 = scalar_select %p158, %s157, 63
      %s160 = smul.addr %s159, 4
      %s161 = scalar_lea.vmem %s3, %s160
      %s162 = smul.u32 32, %s14
      %p163 = scmp.lt.s32.totalorder %s162, 63
      %s164 = scalar_select %p163, %s162, 63
      %s165 = smul.addr %s164, 4
      %s166 = scalar_lea.vmem %s0, %s165
      %s167 = smul.u32 32, %s14
      %s168 = smul.u32 32, %s14
      %p169 = scmp.lt.s32.totalorder %s168, 63
      %s170 = scalar_select %p169, %s168, 63
      %s171 = smul.addr %s170, 4
      %s172 = scalar_lea.vmem %s3, %s171
      %s173 = smul.u32 32, %s14
      %v174 = vld [vmem:[%s166] sm:$0xf]
      %v175 = vld [vmem:[%s166 + $0x4] sm:$0xf]
      %v176 = vld [vmem:[%s166 + $0x8] sm:$0xf]
      %v177 = vld [vmem:[%s166 + $0xc] sm:$0xf]
      %v178 = vld [vmem:[%s166 + $0x10] sm:$0xf]
      %v179 = vld [vmem:[%s166 + $0x14] sm:$0xf]
      %v180 = vld [vmem:[%s166 + $0x18] sm:$0xf]
      %v181 = vld [vmem:[%s166 + $0x1c] sm:$0xf]
      %v182 = vld [vmem:[%s166 + $0x20] sm:$0xf]
      %v183 = vld [vmem:[%s166 + $0x24] sm:$0xf]
      %v184 = vld [vmem:[%s166 + $0x28] sm:$0xf]
      %v185 = vld [vmem:[%s166 + $0x2c] sm:$0xf]
      %v186 = vld [vmem:[%s166 + $0x30] sm:$0xf]
      %v187 = vld [vmem:[%s166 + $0x34] sm:$0xf]
      %v188 = vld [vmem:[%s166 + $0x38] sm:$0xf]
      %v189 = vld [vmem:[%s166 + $0x3c] sm:$0xf]
      %v190 = vld [vmem:[%s166 + $0x40] sm:$0xf]
      %v191 = vld [vmem:[%s166 + $0x44] sm:$0xf]
      %v192 = vld [vmem:[%s166 + $0x48] sm:$0xf]
      %v193 = vld [vmem:[%s166 + $0x4c] sm:$0xf]
      %v194 = vld [vmem:[%s166 + $0x50] sm:$0xf]
      %v195 = vld [vmem:[%s166 + $0x54] sm:$0xf]
      %v196 = vld [vmem:[%s166 + $0x58] sm:$0xf]
      %v197 = vld [vmem:[%s166 + $0x5c] sm:$0xf]
      %v198 = vld [vmem:[%s166 + $0x60] sm:$0xf]
      %v199 = vld [vmem:[%s166 + $0x64] sm:$0xf]
      %v200 = vld [vmem:[%s166 + $0x68] sm:$0xf]
      %v201 = vld [vmem:[%s166 + $0x6c] sm:$0xf]
      %v202 = vld [vmem:[%s166 + $0x70] sm:$0xf]
      %v203 = vld [vmem:[%s166 + $0x74] sm:$0xf]
      %v204 = vld [vmem:[%s166 + $0x78] sm:$0xf]
      %v205 = vld [vmem:[%s166 + $0x7c] sm:$0xf]
      %v206 = vunpack.c.l.bf16 %v174
      %v207 = vunpack.c.l.bf16 %v175
      %v208 = vunpack.c.l.bf16 %v176
      %v209 = vunpack.c.l.bf16 %v177
      %v210 = vunpack.c.l.bf16 %v178
      %v211 = vunpack.c.l.bf16 %v179
      %v212 = vunpack.c.l.bf16 %v180
      %v213 = vunpack.c.l.bf16 %v181
      %v214 = vunpack.c.l.bf16 %v182
      %v215 = vunpack.c.l.bf16 %v183
      %v216 = vunpack.c.l.bf16 %v184
      %v217 = vunpack.c.l.bf16 %v185
      %v218 = vunpack.c.l.bf16 %v186
      %v219 = vunpack.c.l.bf16 %v187
      %v220 = vunpack.c.l.bf16 %v188
      %v221 = vunpack.c.l.bf16 %v189
      %v222 = vunpack.c.l.bf16 %v190
      %v223 = vunpack.c.l.bf16 %v191
      %v224 = vunpack.c.l.bf16 %v192
      %v225 = vunpack.c.l.bf16 %v193
      %v226 = vunpack.c.l.bf16 %v194
      %v227 = vunpack.c.l.bf16 %v195
      %v228 = vunpack.c.l.bf16 %v196
      %v229 = vunpack.c.l.bf16 %v197
      %v230 = vunpack.c.l.bf16 %v198
      %v231 = vunpack.c.l.bf16 %v199
      %v232 = vunpack.c.l.bf16 %v200
      %v233 = vunpack.c.l.bf16 %v201
      %v234 = vunpack.c.l.bf16 %v202
      %v235 = vunpack.c.l.bf16 %v203
      %v236 = vunpack.c.l.bf16 %v204
      %v237 = vunpack.c.l.bf16 %v205
      %v238 = vld [vmem:[%s1] sm:$0x1]
      %v240 = vperm.slane %v238, 0
      %v242 = vmul.f32 %v206, %v240
      %v243 = vmul.f32 %v207, %v240
      %v244 = vmul.f32 %v208, %v240
      %v245 = vmul.f32 %v209, %v240
      %v246 = vmul.f32 %v210, %v240
      %v247 = vmul.f32 %v211, %v240
      %v248 = vmul.f32 %v212, %v240
      %v249 = vmul.f32 %v213, %v240
      %v250 = vmul.f32 %v214, %v240
      %v251 = vmul.f32 %v215, %v240
      %v252 = vmul.f32 %v216, %v240
      %v253 = vmul.f32 %v217, %v240
      %v254 = vmul.f32 %v218, %v240
      %v255 = vmul.f32 %v219, %v240
      %v256 = vmul.f32 %v220, %v240
      %v257 = vmul.f32 %v221, %v240
      %v258 = vmul.f32 %v222, %v240
      %v259 = vmul.f32 %v223, %v240
      %v260 = vmul.f32 %v224, %v240
      %v261 = vmul.f32 %v225, %v240
      %v262 = vmul.f32 %v226, %v240
      %v263 = vmul.f32 %v227, %v240
      %v264 = vmul.f32 %v228, %v240
      %v265 = vmul.f32 %v229, %v240
      %v266 = vmul.f32 %v230, %v240
      %v267 = vmul.f32 %v231, %v240
      %v268 = vmul.f32 %v232, %v240
      %v269 = vmul.f32 %v233, %v240
      %v270 = vmul.f32 %v234, %v240
      %v271 = vmul.f32 %v235, %v240
      %v272 = vmul.f32 %v236, %v240
      %v273 = vmul.f32 %v237, %v240
      %v274 = vld [vmem:[%s2] sm:$0x1]
      %v276 = vperm.slane %v274, 0
      %v278 = vadd.f32 %v242, %v276
      %v279 = vadd.f32 %v243, %v276
      %v280 = vadd.f32 %v244, %v276
      %v281 = vadd.f32 %v245, %v276
      %v282 = vadd.f32 %v246, %v276
      %v283 = vadd.f32 %v247, %v276
      %v284 = vadd.f32 %v248, %v276
      %v285 = vadd.f32 %v249, %v276
      %v286 = vadd.f32 %v250, %v276
      %v287 = vadd.f32 %v251, %v276
      %v288 = vadd.f32 %v252, %v276
      %v289 = vadd.f32 %v253, %v276
      %v290 = vadd.f32 %v254, %v276
      %v291 = vadd.f32 %v255, %v276
      %v292 = vadd.f32 %v256, %v276
      %v293 = vadd.f32 %v257, %v276
      %v294 = vadd.f32 %v258, %v276
      %v295 = vadd.f32 %v259, %v276
      %v296 = vadd.f32 %v260, %v276
      %v297 = vadd.f32 %v261, %v276
      %v298 = vadd.f32 %v262, %v276
      %v299 = vadd.f32 %v263, %v276
      %v300 = vadd.f32 %v264, %v276
      %v301 = vadd.f32 %v265, %v276
      %v302 = vadd.f32 %v266, %v276
      %v303 = vadd.f32 %v267, %v276
      %v304 = vadd.f32 %v268, %v276
      %v305 = vadd.f32 %v269, %v276
      %v306 = vadd.f32 %v270, %v276
      %v307 = vadd.f32 %v271, %v276
      %v308 = vadd.f32 %v272, %v276
      %v309 = vadd.f32 %v273, %v276
      %v310 = vmax.f32 %v278, 0.0
      %v311 = vmax.f32 %v279, 0.0
      %v312 = vmax.f32 %v280, 0.0
      %v313 = vmax.f32 %v281, 0.0
      %v314 = vmax.f32 %v282, 0.0
      %v315 = vmax.f32 %v283, 0.0
      %v316 = vmax.f32 %v284, 0.0
      %v317 = vmax.f32 %v285, 0.0
      %v318 = vmax.f32 %v286, 0.0
      %v319 = vmax.f32 %v287, 0.0
      %v320 = vmax.f32 %v288, 0.0
      %v321 = vmax.f32 %v289, 0.0
      %v322 = vmax.f32 %v290, 0.0
      %v323 = vmax.f32 %v291, 0.0
      %v324 = vmax.f32 %v292, 0.0
      %v325 = vmax.f32 %v293, 0.0
      %v326 = vmax.f32 %v294, 0.0
      %v327 = vmax.f32 %v295, 0.0
      %v328 = vmax.f32 %v296, 0.0
      %v329 = vmax.f32 %v297, 0.0
      %v330 = vmax.f32 %v298, 0.0
      %v331 = vmax.f32 %v299, 0.0
      %v332 = vmax.f32 %v300, 0.0
      %v333 = vmax.f32 %v301, 0.0
      %v334 = vmax.f32 %v302, 0.0
      %v335 = vmax.f32 %v303, 0.0
      %v336 = vmax.f32 %v304, 0.0
      %v337 = vmax.f32 %v305, 0.0
      %v338 = vmax.f32 %v306, 0.0
      %v339 = vmax.f32 %v307, 0.0
      %v340 = vmax.f32 %v308, 0.0
      %v341 = vmax.f32 %v309, 0.0
      %v342 = vpack.c.bf16 %v310, %v310
      %v343 = vpack.c.bf16 %v311, %v311
      %v344 = vpack.c.bf16 %v312, %v312
      %v345 = vpack.c.bf16 %v313, %v313
      %v346 = vpack.c.bf16 %v314, %v314
      %v347 = vpack.c.bf16 %v315, %v315
      %v348 = vpack.c.bf16 %v316, %v316
      %v349 = vpack.c.bf16 %v317, %v317
      %v350 = vpack.c.bf16 %v318, %v318
      %v351 = vpack.c.bf16 %v319, %v319
      %v352 = vpack.c.bf16 %v320, %v320
      %v353 = vpack.c.bf16 %v321, %v321
      %v354 = vpack.c.bf16 %v322, %v322
      %v355 = vpack.c.bf16 %v323, %v323
      %v356 = vpack.c.bf16 %v324, %v324
      %v357 = vpack.c.bf16 %v325, %v325
      %v358 = vpack.c.bf16 %v326, %v326
      %v359 = vpack.c.bf16 %v327, %v327
      %v360 = vpack.c.bf16 %v328, %v328
      %v361 = vpack.c.bf16 %v329, %v329
      %v362 = vpack.c.bf16 %v330, %v330
      %v363 = vpack.c.bf16 %v331, %v331
      %v364 = vpack.c.bf16 %v332, %v332
      %v365 = vpack.c.bf16 %v333, %v333
      %v366 = vpack.c.bf16 %v334, %v334
      %v367 = vpack.c.bf16 %v335, %v335
      %v368 = vpack.c.bf16 %v336, %v336
      %v369 = vpack.c.bf16 %v337, %v337
      %v370 = vpack.c.bf16 %v338, %v338
      %v371 = vpack.c.bf16 %v339, %v339
      %v372 = vpack.c.bf16 %v340, %v340
      %v373 = vpack.c.bf16 %v341, %v341
      %374 = vst [vmem:[%s172] sm:$0xf] %v342
      %375 = vst [vmem:[%s172 + $0x4] sm:$0xf] %v343
      %376 = vst [vmem:[%s172 + $0x8] sm:$0xf] %v344
      %377 = vst [vmem:[%s172 + $0xc] sm:$0xf] %v345
      %378 = vst [vmem:[%s172 + $0x10] sm:$0xf] %v346
      %379 = vst [vmem:[%s172 + $0x14] sm:$0xf] %v347
      %380 = vst [vmem:[%s172 + $0x18] sm:$0xf] %v348
      %381 = vst [vmem:[%s172 + $0x1c] sm:$0xf] %v349
      %382 = vst [vmem:[%s172 + $0x20] sm:$0xf] %v350
      %383 = vst [vmem:[%s172 + $0x24] sm:$0xf] %v351
      %384 = vst [vmem:[%s172 + $0x28] sm:$0xf] %v352
      %385 = vst [vmem:[%s172 + $0x2c] sm:$0xf] %v353
      %386 = vst [vmem:[%s172 + $0x30] sm:$0xf] %v354
      %387 = vst [vmem:[%s172 + $0x34] sm:$0xf] %v355
      %388 = vst [vmem:[%s172 + $0x38] sm:$0xf] %v356
      %389 = vst [vmem:[%s172 + $0x3c] sm:$0xf] %v357
      %390 = vst [vmem:[%s172 + $0x40] sm:$0xf] %v358
      %391 = vst [vmem:[%s172 + $0x44] sm:$0xf] %v359
      %392 = vst [vmem:[%s172 + $0x48] sm:$0xf] %v360
      %393 = vst [vmem:[%s172 + $0x4c] sm:$0xf] %v361
      %394 = vst [vmem:[%s172 + $0x50] sm:$0xf] %v362
      %395 = vst [vmem:[%s172 + $0x54] sm:$0xf] %v363
      %396 = vst [vmem:[%s172 + $0x58] sm:$0xf] %v364
      %397 = vst [vmem:[%s172 + $0x5c] sm:$0xf] %v365
      %398 = vst [vmem:[%s172 + $0x60] sm:$0xf] %v366
      %399 = vst [vmem:[%s172 + $0x64] sm:$0xf] %v367
      %400 = vst [vmem:[%s172 + $0x68] sm:$0xf] %v368
      %401 = vst [vmem:[%s172 + $0x6c] sm:$0xf] %v369
      %402 = vst [vmem:[%s172 + $0x70] sm:$0xf] %v370
      %403 = vst [vmem:[%s172 + $0x74] sm:$0xf] %v371
      %404 = vst [vmem:[%s172 + $0x78] sm:$0xf] %v372
      %405 = vst [vmem:[%s172 + $0x7c] sm:$0xf] %v373
      %s406 = smul.u32 32, %s14
      %p407 = scmp.lt.s32.totalorder %s406, 63
      %s408 = scalar_select %p407, %s406, 63
      %s409 = smul.addr %s408, 4
      %s410 = scalar_lea.vmem %s3, %s409
      // Predicated region
      $region33: #{basic_block_forward.6} parent=31 // pred_check
        %p411 = pneg %p100
      $region34: #{basic_block_forward.6} parent=31 // pred_check_branch
        %413 = sbr.rel (%p411) target = $region36
      $region35: #{basic_block_forward.6} parent=31 // pred_region
        %s414 = smul.u32 32, %s14
      $region36: #{basic_block_forward.6} parent=31 // pred_fallthru
        _
    $region32: #{basic_block_forward.6} parent=5 // pred_fallthru
      _
    %p415 = scmp.le.s32.totalorder 2, %s9
    // Predicated region
    $region37: #{basic_block_forward.6} parent=5 // pred_check
      %p416 = pneg %p415
    $region38: #{basic_block_forward.6} parent=5 // pred_check_branch
      %418 = sbr.rel (%p416) target = $region40
    $region39: #{basic_block_forward.6} parent=5 // pred_region
      %s419 = ssub.s32 %s9, 2
      // Predicated region
      $region41: #{basic_block_forward.6} parent=39 // pred_check
        %p420 = pneg %p106
      $region42: #{basic_block_forward.6} parent=39 // pred_check_branch
        %422 = sbr.rel (%p420) target = $region44
      $region43: #{basic_block_forward.6} parent=39 // pred_region
        %s423 = smul.u32 32, %s15
        %p424 = scmp.lt.s32.totalorder %s423, 63
        %s425 = scalar_select %p424, %s423, 63
        %s426 = smul.addr %s425, 4
        %s427 = scalar_lea.vmem %s3, %s426
      $region44: #{basic_block_forward.6} parent=39 // pred_fallthru
        _
    $region40: #{basic_block_forward.6} parent=5 // pred_fallthru
      _
  $region6: #{basic_block_forward.6} parent=0 // loop_footer
    %s13 = sadd.s32 1, %s9
  $region7: #{basic_block_forward.6} parent=0 // loop_footer_branch
    %8 = sbr.rel target = $region3
  $region8: #{basic_block_forward.6} parent=0 // loop_exit
    _

// kernel: basic_block_forward.5
$region0: #{basic_block_forward.5}
  #allocation0 [shape = 'u32[]', space=smem, size = 0x4, offset = 0x4, fixed_abs, tag = 'smem constant byte address 0x4 - core index']
  #allocation1 [shape = 'u32[72,128]{1,0:T(1,128)}', space=vmem, size = 0x9000, scoped, tag = 'internal scratch']
  %s0 = inlined_call_operand.vmem [shape: bf16[512,128], index: 0, kind: input, shape index: {}]
  %s1 = inlined_call_operand.vmem [shape: bf16[128,128], index: 1, kind: input, shape index: {}]
  %s2 = inlined_call_operand.vmem [shape: bf16[512,128], index: 2, kind: output, shape index: {0}]
  %s3 = inlined_call_operand.vmem [shape: f32[2,2,128], index: 3, kind: output, shape index: {1}]
  %4 = xla_tuple %s2, %s3
  %s5 = sld [smem:[#allocation0]]
  $region49: #{basic_block_forward.5} parent=0
    _
  %s7 = ssub.s32 1, %s5
  %s8 = scalar_select 0, %s7, %s5
  loop: start=0, step=1, limit=4
  $region2: #{basic_block_forward.5} parent=0 // loop_pre_header
    _
  $region3: #{basic_block_forward.5} parent=0 // loop_header
    %s10 = sphi 0, %s14
    %p11 = scmp.ge.s32.totalorder %s10, 4
    %s20 = sphi 0, %s22
    %s23 = sphi 0, %s20
    %s24 = sphi 0, %s23
    %s40 = sphi 0, %s24
    %s44 = sphi 0, %s44
    %s46 = sphi 0, %s44
    %s47 = sphi 0, %s46
    %s61 = sphi 0, %s47
    %s67 = sphi 0, %s69
    %s70 = sphi 0, %s67
    %s71 = sphi 0, %s70
    %s87 = sphi 0, %s71
    %s93 = sphi 0, %s95
    %s96 = sphi 0, %s93
    %s97 = sphi 0, %s96
    %s113 = sphi 0, %s97
  $region4: #{basic_block_forward.5} parent=0 // loop_header_branch
    %13 = sbr.rel (%p11) target = $region8
  $region5: #{basic_block_forward.5} parent=0 // loop_body
    %s15 = ssub.s32 %s10, 1
    %s16 = ssub.s32 %s10, 2
    %s17 = sadd.s32 %s10, 1
    %s18 = ssub.s32 %s10, %s17
    %p19 = scmp.eq.s32.totalorder %s18, 0
    %s21 = sadd.s32 %s20, 1
    %s22 = scalar_select %p19, %s20, %s21
    %p25 = pneg %p19
    %p26 = scmp.eq.s32.totalorder %s10, 1
    %p27 = por %p25, %p26
    %p28 = scmp.ne.s32.totalorder %s20, %s23
    %p29 = scmp.eq.s32.totalorder %s10, 0
    %p30 = por %p28, %p29
    %p31 = scmp.ne.s32.totalorder %s20, %s23
    %p32 = scmp.eq.s32.totalorder %s15, 1
    %p33 = por %p31, %p32
    %p34 = scmp.ne.s32.totalorder %s23, %s24
    %p35 = scmp.eq.s32.totalorder %s15, 0
    %p36 = por %p34, %p35
    %p37 = scmp.ne.s32.totalorder %s23, %s24
    %p38 = scmp.eq.s32.totalorder %s16, 1
    %p39 = por %p37, %p38
    %p41 = scmp.ne.s32.totalorder %s24, %s40
    %p42 = scmp.eq.s32.totalorder %s16, 0
    %p43 = por %p41, %p42
    %s45 = sadd.s32 %s44, 1
    %p48 = scmp.eq.s32.totalorder %s10, 1
    %p49 = scmp.ne.s32.totalorder %s44, %s46
    %p50 = scmp.eq.s32.totalorder %s10, 0
    %p51 = por %p49, %p50
    %p52 = scmp.ne.s32.totalorder %s44, %s46
    %p53 = scmp.eq.s32.totalorder %s15, 1
    %p54 = por %p52, %p53
    %p55 = scmp.ne.s32.totalorder %s46, %s47
    %p56 = scmp.eq.s32.totalorder %s15, 0
    %p57 = por %p55, %p56
    %p58 = scmp.ne.s32.totalorder %s46, %s47
    %p59 = scmp.eq.s32.totalorder %s16, 1
    %p60 = por %p58, %p59
    %p62 = scmp.ne.s32.totalorder %s47, %s61
    %p63 = scmp.eq.s32.totalorder %s16, 0
    %p64 = por %p62, %p63
    %s65 = ssub.s32 %s10, %s17
    %p66 = scmp.eq.s32.totalorder %s65, 0
    %s68 = sadd.s32 %s67, 1
    %s69 = scalar_select %p66, %s67, %s68
    %p72 = pneg %p66
    %p73 = scmp.eq.s32.totalorder %s10, 1
    %p74 = por %p72, %p73
    %p75 = scmp.ne.s32.totalorder %s67, %s70
    %p76 = scmp.eq.s32.totalorder %s10, 0
    %p77 = por %p75, %p76
    %p78 = scmp.ne.s32.totalorder %s67, %s70
    %p79 = scmp.eq.s32.totalorder %s15, 1
    %p80 = por %p78, %p79
    %p81 = scmp.ne.s32.totalorder %s70, %s71
    %p82 = scmp.eq.s32.totalorder %s15, 0
    %p83 = por %p81, %p82
    %p84 = scmp.ne.s32.totalorder %s70, %s71
    %p85 = scmp.eq.s32.totalorder %s16, 1
    %p86 = por %p84, %p85
    %p88 = scmp.ne.s32.totalorder %s71, %s87
    %p89 = scmp.eq.s32.totalorder %s16, 0
    %p90 = por %p88, %p89
    %s91 = ssub.s32 %s10, %s17
    %p92 = scmp.eq.s32.totalorder %s91, 0
    %s94 = sadd.s32 %s93, 1
    %s95 = scalar_select %p92, %s93, %s94
    %p98 = pneg %p92
    %p99 = scmp.eq.s32.totalorder %s10, 1
    %p100 = por %p98, %p99
    %p101 = scmp.ne.s32.totalorder %s93, %s96
    %p102 = scmp.eq.s32.totalorder %s10, 0
    %p103 = por %p101, %p102
    %p104 = scmp.ne.s32.totalorder %s93, %s96
    %p105 = scmp.eq.s32.totalorder %s15, 1
    %p106 = por %p104, %p105
    %p107 = scmp.ne.s32.totalorder %s96, %s97
    %p108 = scmp.eq.s32.totalorder %s15, 0
    %p109 = por %p107, %p108
    %p110 = scmp.ne.s32.totalorder %s96, %s97
    %p111 = scmp.eq.s32.totalorder %s16, 1
    %p112 = por %p110, %p111
    %p114 = scmp.ne.s32.totalorder %s97, %s113
    %p115 = scmp.eq.s32.totalorder %s16, 0
    %p116 = por %p114, %p115
    %p117 = scmp.le.s32.totalorder 1, %s10
    %p118 = scmp.lt.s32.totalorder %s10, 3
    %p119 = pnand %p117, %p118
    %p120 = pneg %p119
    // Predicated region
    $region9: #{basic_block_forward.5} parent=5 // pred_check
      _
    $region10: #{basic_block_forward.5} parent=5 // pred_check_branch
      %122 = sbr.rel (%p119) target = $region12
    $region11: #{basic_block_forward.5} parent=5 // pred_region
      %s123 = ssub.s32 %s10, 1
      // Predicated region
      $region13: #{basic_block_forward.5} parent=11 // pred_check
        %p124 = pneg %p57
      $region14: #{basic_block_forward.5} parent=11 // pred_check_branch
        %126 = sbr.rel (%p124) target = $region16
      $region15: #{basic_block_forward.5} parent=11 // pred_region
        _
      $region16: #{basic_block_forward.5} parent=11 // pred_fallthru
        _
    $region12: #{basic_block_forward.5} parent=5 // pred_fallthru
      _
    %p127 = scmp.lt.s32.totalorder %s10, 2
    // Predicated region
    $region17: #{basic_block_forward.5} parent=5 // pred_check
      %p128 = pneg %p127
    $region18: #{basic_block_forward.5} parent=5 // pred_check_branch
      %130 = sbr.rel (%p128) target = $region20
    $region19: #{basic_block_forward.5} parent=5 // pred_region
      // Predicated region
      $region21: #{basic_block_forward.5} parent=19 // pred_check
        %p131 = pneg %p30
      $region22: #{basic_block_forward.5} parent=19 // pred_check_branch
        %133 = sbr.rel (%p131) target = $region24
      $region23: #{basic_block_forward.5} parent=19 // pred_region
        %s134 = smul.u32 32, %s10
        %p135 = scmp.lt.s32.totalorder %s134, 63
        %s136 = scalar_select %p135, %s134, 63
        %s137 = smul.addr %s136, 4
        %s138 = scalar_lea.vmem %s0, %s137
        %s139 = smul.u32 32, %s10
      $region24: #{basic_block_forward.5} parent=19 // pred_fallthru
        _
    $region20: #{basic_block_forward.5} parent=5 // pred_fallthru
      _
    %p140 = scmp.le.s32.totalorder 1, %s10
    %p141 = scmp.lt.s32.totalorder %s10, 3
    %p142 = pnand %p140, %p141
    %p143 = pneg %p142
    // Predicated region
    $region25: #{basic_block_forward.5} parent=5 // pred_check
      _
    $region26: #{basic_block_forward.5} parent=5 // pred_check_branch
      %145 = sbr.rel (%p142) target = $region28
    $region27: #{basic_block_forward.5} parent=5 // pred_region
      %s146 = ssub.s32 %s10, 1
      %s147 = smul.u32 32, %s15
      %p148 = scmp.lt.s32.totalorder %s147, 63
      %s149 = scalar_select %p148, %s147, 63
      %s150 = smul.addr %s149, 4
      %s151 = scalar_lea.vmem %s0, %s150
      %p152 = pneg %p36
      %p153 = pneg %p33
      %p154 = pneg %p57
      %p155 = pneg %p54
      %p156 = pneg %p83
      %p157 = pneg %p80
      %s158 = smul.u32 32, %s15
      %p159 = scmp.lt.s32.totalorder %s158, 63
      %s160 = scalar_select %p159, %s158, 63
      %s161 = smul.addr %s160, 4
      %s162 = scalar_lea.vmem %s2, %s161
      %p163 = pneg %p109
      %p164 = pneg %p106
      %p165 = scmp.lt.s32.totalorder %s15, 1
      %s166 = scalar_select %p165, %s15, 1
      %s167 = smul.addr %s166, 2
      %s168 = scalar_lea.vmem %s3, %s167
      %s169 = smul.u32 32, %s15
      %p170 = scmp.lt.s32.totalorder %s169, 63
      %s171 = scalar_select %p170, %s169, 63
      %s172 = smul.addr %s171, 4
      %s173 = scalar_lea.vmem %s0, %s172
      %s174 = smul.u32 32, %s15
      %s175 = smul.u32 32, %s15
      %p176 = scmp.lt.s32.totalorder %s175, 63
      %s177 = scalar_select %p176, %s175, 63
      %s178 = smul.addr %s177, 4
      %s179 = scalar_lea.vmem %s2, %s178
      %s180 = smul.u32 32, %s15
      %p181 = scmp.lt.s32.totalorder %s15, 1
      %s182 = scalar_select %p181, %s15, 1
      %s183 = smul.addr %s182, 2
      %s184 = scalar_lea.vmem %s3, %s183
      %v185 = vld [vmem:[%s173] sm:$0xf]
      %v186 = vld [vmem:[%s173 + $0x4] sm:$0xf]
      %v187 = vld [vmem:[%s173 + $0x8] sm:$0xf]
      %v188 = vld [vmem:[%s173 + $0xc] sm:$0xf]
      %v189 = vld [vmem:[%s173 + $0x10] sm:$0xf]
      %v190 = vld [vmem:[%s173 + $0x14] sm:$0xf]
      %v191 = vld [vmem:[%s173 + $0x18] sm:$0xf]
      %v192 = vld [vmem:[%s173 + $0x1c] sm:$0xf]
      %v193 = vld [vmem:[%s173 + $0x20] sm:$0xf]
      %v194 = vld [vmem:[%s173 + $0x24] sm:$0xf]
      %v195 = vld [vmem:[%s173 + $0x28] sm:$0xf]
      %v196 = vld [vmem:[%s173 + $0x2c] sm:$0xf]
      %v197 = vld [vmem:[%s173 + $0x30] sm:$0xf]
      %v198 = vld [vmem:[%s173 + $0x34] sm:$0xf]
      %v199 = vld [vmem:[%s173 + $0x38] sm:$0xf]
      %v200 = vld [vmem:[%s173 + $0x3c] sm:$0xf]
      %v201 = vld [vmem:[%s173 + $0x40] sm:$0xf]
      %v202 = vld [vmem:[%s173 + $0x44] sm:$0xf]
      %v203 = vld [vmem:[%s173 + $0x48] sm:$0xf]
      %v204 = vld [vmem:[%s173 + $0x4c] sm:$0xf]
      %v205 = vld [vmem:[%s173 + $0x50] sm:$0xf]
      %v206 = vld [vmem:[%s173 + $0x54] sm:$0xf]
      %v207 = vld [vmem:[%s173 + $0x58] sm:$0xf]
      %v208 = vld [vmem:[%s173 + $0x5c] sm:$0xf]
      %v209 = vld [vmem:[%s173 + $0x60] sm:$0xf]
      %v210 = vld [vmem:[%s173 + $0x64] sm:$0xf]
      %v211 = vld [vmem:[%s173 + $0x68] sm:$0xf]
      %v212 = vld [vmem:[%s173 + $0x6c] sm:$0xf]
      %v213 = vld [vmem:[%s173 + $0x70] sm:$0xf]
      %v214 = vld [vmem:[%s173 + $0x74] sm:$0xf]
      %v215 = vld [vmem:[%s173 + $0x78] sm:$0xf]
      %v216 = vld [vmem:[%s173 + $0x7c] sm:$0xf]
      %v217 = vld [vmem:[%s1] sm:$0xf]
      %v218 = vld [vmem:[%s1 + $0x4] sm:$0xf]
      %v219 = vld [vmem:[%s1 + $0x8] sm:$0xf]
      %v220 = vld [vmem:[%s1 + $0xc] sm:$0xf]
      %v221 = vld [vmem:[%s1 + $0x10] sm:$0xf]
      %v222 = vld [vmem:[%s1 + $0x14] sm:$0xf]
      %v223 = vld [vmem:[%s1 + $0x18] sm:$0xf]
      %v224 = vld [vmem:[%s1 + $0x1c] sm:$0xf]
      %v225 = vld [vmem:[%s1 + $0x20] sm:$0xf]
      %v226 = vld [vmem:[%s1 + $0x24] sm:$0xf]
      %v227 = vld [vmem:[%s1 + $0x28] sm:$0xf]
      %v228 = vld [vmem:[%s1 + $0x2c] sm:$0xf]
      %v229 = vld [vmem:[%s1 + $0x30] sm:$0xf]
      %v230 = vld [vmem:[%s1 + $0x34] sm:$0xf]
      %v231 = vld [vmem:[%s1 + $0x38] sm:$0xf]
      %v232 = vld [vmem:[%s1 + $0x3c] sm:$0xf]
      %v265 = vunpack.c.l.b16 %v185
      %v266 = vunpack.c.l.b16 %v186
      %v267 = vunpack.c.l.b16 %v187
      %v268 = vunpack.c.l.b16 %v188
      %v269 = vunpack.c.l.b16 %v189
      %v270 = vunpack.c.l.b16 %v190
      %v271 = vunpack.c.l.b16 %v191
      %v272 = vunpack.c.l.b16 %v192
      %v273 = vunpack.c.l.b16 %v193
      %v274 = vunpack.c.l.b16 %v194
      %v275 = vunpack.c.l.b16 %v195
      %v276 = vunpack.c.l.b16 %v196
      %v277 = vunpack.c.l.b16 %v197
      %v278 = vunpack.c.l.b16 %v198
      %v279 = vunpack.c.l.b16 %v199
      %v280 = vunpack.c.l.b16 %v200
      %v281 = vunpack.c.l.b16 %v201
      %v282 = vunpack.c.l.b16 %v202
      %v283 = vunpack.c.l.b16 %v203
      %v284 = vunpack.c.l.b16 %v204
      %v285 = vunpack.c.l.b16 %v205
      %v286 = vunpack.c.l.b16 %v206
      %v287 = vunpack.c.l.b16 %v207
      %v288 = vunpack.c.l.b16 %v208
      %v289 = vunpack.c.l.b16 %v209
      %v290 = vunpack.c.l.b16 %v210
      %v291 = vunpack.c.l.b16 %v211
      %v292 = vunpack.c.l.b16 %v212
      %v293 = vunpack.c.l.b16 %v213
      %v294 = vunpack.c.l.b16 %v214
      %v295 = vunpack.c.l.b16 %v215
      %v296 = vunpack.c.l.b16 %v216
      %v297 = vpack.c.b16 %v266, %v265
      %v298 = vpack.c.b16 %v268, %v267
      %v299 = vpack.c.b16 %v270, %v269
      %v300 = vpack.c.b16 %v272, %v271
      %v301 = vpack.c.b16 %v274, %v273
      %v302 = vpack.c.b16 %v276, %v275
      %v303 = vpack.c.b16 %v278, %v277
      %v304 = vpack.c.b16 %v280, %v279
      %v305 = vpack.c.b16 %v282, %v281
      %v306 = vpack.c.b16 %v284, %v283
      %v307 = vpack.c.b16 %v286, %v285
      %v308 = vpack.c.b16 %v288, %v287
      %v309 = vpack.c.b16 %v290, %v289
      %v310 = vpack.c.b16 %v292, %v291
      %v311 = vpack.c.b16 %v294, %v293
      %v312 = vpack.c.b16 %v296, %v295
      %v345 = vunpack.c.l.b16 %v217
      %v346 = vunpack.c.l.b16 %v218
      %v347 = vunpack.c.l.b16 %v219
      %v348 = vunpack.c.l.b16 %v220
      %v349 = vunpack.c.l.b16 %v221
      %v350 = vunpack.c.l.b16 %v222
      %v351 = vunpack.c.l.b16 %v223
      %v352 = vunpack.c.l.b16 %v224
      %v353 = vunpack.c.l.b16 %v225
      %v354 = vunpack.c.l.b16 %v226
      %v355 = vunpack.c.l.b16 %v227
      %v356 = vunpack.c.l.b16 %v228
      %v357 = vunpack.c.l.b16 %v229
      %v358 = vunpack.c.l.b16 %v230
      %v359 = vunpack.c.l.b16 %v231
      %v360 = vunpack.c.l.b16 %v232
      %v361 = vpack.c.b16 %v346, %v345
      %v362 = vpack.c.b16 %v348, %v347
      %v363 = vpack.c.b16 %v350, %v349
      %v364 = vpack.c.b16 %v352, %v351
      %v365 = vpack.c.b16 %v354, %v353
      %v366 = vpack.c.b16 %v356, %v355
      %v367 = vpack.c.b16 %v358, %v357
      %v368 = vpack.c.b16 %v360, %v359
      %377 = vmatpush.bf16.msra.mxu0 %v368
      %378 = vmatpush.bf16.msra.mxu0 %v367
      %379 = vmatpush.bf16.msra.mxu0 %v366
      %380 = vmatpush.bf16.msra.mxu0 %v365
      %381 = vmatpush.bf16.msra.mxu0 %v364
      %382 = vmatpush.bf16.msra.mxu0 %v363
      %383 = vmatpush.bf16.msra.mxu0 %v362
      %384 = vmatpush.bf16.msra.mxu0 %v361
      %385 = vmatmul.bf16.gmra.mxu0 %v297
      %v386 = vpop.f32.mrf.mxu0
      %v387 = vadd.f32 0.0, %v386
      %v388 = vpop.f32.mrf.mxu0
      %v389 = vadd.f32 0.0, %v388
      %390 = vmatmul.bf16.gmra.mxu0 %v298
      %v391 = vpop.f32.mrf.mxu0
      %v392 = vadd.f32 0.0, %v391
      %v393 = vpop.f32.mrf.mxu0
      %v394 = vadd.f32 0.0, %v393
      %395 = vmatmul.bf16.gmra.mxu0 %v299
      %v396 = vpop.f32.mrf.mxu0
      %v397 = vadd.f32 0.0, %v396
      %v398 = vpop.f32.mrf.mxu0
      %v399 = vadd.f32 0.0, %v398
      %400 = vmatmul.bf16.gmra.mxu0 %v300
      %v401 = vpop.f32.mrf.mxu0
      %v402 = vadd.f32 0.0, %v401
      %v403 = vpop.f32.mrf.mxu0
      %v404 = vadd.f32 0.0, %v403
      %405 = vmatmul.bf16.gmra.mxu0 %v301
      %v406 = vpop.f32.mrf.mxu0
      %v407 = vadd.f32 0.0, %v406
      %v408 = vpop.f32.mrf.mxu0
      %v409 = vadd.f32 0.0, %v408
      %410 = vmatmul.bf16.gmra.mxu0 %v302
      %v411 = vpop.f32.mrf.mxu0
      %v412 = vadd.f32 0.0, %v411
      %v413 = vpop.f32.mrf.mxu0
      %v414 = vadd.f32 0.0, %v413
      %415 = vmatmul.bf16.gmra.mxu0 %v303
      %v416 = vpop.f32.mrf.mxu0
      %v417 = vadd.f32 0.0, %v416
      %v418 = vpop.f32.mrf.mxu0
      %v419 = vadd.f32 0.0, %v418
      %420 = vmatmul.bf16.gmra.mxu0 %v304
      %v421 = vpop.f32.mrf.mxu0
      %v422 = vadd.f32 0.0, %v421
      %v423 = vpop.f32.mrf.mxu0
      %v424 = vadd.f32 0.0, %v423
      %425 = vmatmul.bf16.gmra.mxu0 %v305
      %v426 = vpop.f32.mrf.mxu0
      %v427 = vadd.f32 0.0, %v426
      %v428 = vpop.f32.mrf.mxu0
      %v429 = vadd.f32 0.0, %v428
      %430 = vmatmul.bf16.gmra.mxu0 %v306
      %v431 = vpop.f32.mrf.mxu0
      %v432 = vadd.f32 0.0, %v431
      %v433 = vpop.f32.mrf.mxu0
      %v434 = vadd.f32 0.0, %v433
      %435 = vmatmul.bf16.gmra.mxu0 %v307
      %v436 = vpop.f32.mrf.mxu0
      %v437 = vadd.f32 0.0, %v436
      %v438 = vpop.f32.mrf.mxu0
      %v439 = vadd.f32 0.0, %v438
      %440 = vmatmul.bf16.gmra.mxu0 %v308
      %v441 = vpop.f32.mrf.mxu0
      %v442 = vadd.f32 0.0, %v441
      %v443 = vpop.f32.mrf.mxu0
      %v444 = vadd.f32 0.0, %v443
      %445 = vmatmul.bf16.gmra.mxu0 %v309
      %v446 = vpop.f32.mrf.mxu0
      %v447 = vadd.f32 0.0, %v446
      %v448 = vpop.f32.mrf.mxu0
      %v449 = vadd.f32 0.0, %v448
      %450 = vmatmul.bf16.gmra.mxu0 %v310
      %v451 = vpop.f32.mrf.mxu0
      %v452 = vadd.f32 0.0, %v451
      %v453 = vpop.f32.mrf.mxu0
      %v454 = vadd.f32 0.0, %v453
      %455 = vmatmul.bf16.gmra.mxu0 %v311
      %v456 = vpop.f32.mrf.mxu0
      %v457 = vadd.f32 0.0, %v456
      %v458 = vpop.f32.mrf.mxu0
      %v459 = vadd.f32 0.0, %v458
      %460 = vmatmul.bf16.gmra.mxu0 %v312
      %v461 = vpop.f32.mrf.mxu0
      %v462 = vadd.f32 0.0, %v461
      %v463 = vpop.f32.mrf.mxu0
      %v464 = vadd.f32 0.0, %v463
      %465 = vdwg.mxu0
      %v466 = vadd.f32 %v387, %v389
      %v467 = vadd.f32 %v466, %v392
      %v468 = vadd.f32 %v467, %v394
      %v469 = vadd.f32 %v468, %v397
      %v470 = vadd.f32 %v469, %v399
      %v471 = vadd.f32 %v470, %v402
      %v472 = vadd.f32 %v471, %v404
      %v473 = vadd.f32 %v472, %v407
      %v474 = vadd.f32 %v473, %v409
      %v475 = vadd.f32 %v474, %v412
      %v476 = vadd.f32 %v475, %v414
      %v477 = vadd.f32 %v476, %v417
      %v478 = vadd.f32 %v477, %v419
      %v479 = vadd.f32 %v478, %v422
      %v480 = vadd.f32 %v479, %v424
      %v481 = vadd.f32 %v480, %v427
      %v482 = vadd.f32 %v481, %v429
      %v483 = vadd.f32 %v482, %v432
      %v484 = vadd.f32 %v483, %v434
      %v485 = vadd.f32 %v484, %v437
      %v486 = vadd.f32 %v485, %v439
      %v487 = vadd.f32 %v486, %v442
      %v488 = vadd.f32 %v487, %v444
      %v489 = vadd.f32 %v488, %v447
      %v490 = vadd.f32 %v489, %v449
      %v491 = vadd.f32 %v490, %v452
      %v492 = vadd.f32 %v491, %v454
      %v493 = vadd.f32 %v492, %v457
      %v494 = vadd.f32 %v493, %v459
      %v495 = vadd.f32 %v494, %v462
      %v496 = vadd.f32 %v495, %v464
      %v497 = vrot.slane %v496, 4
      %v498 = vadd.f32 %v496, %v497
      %v499 = vrot.slane %v498, 2
      %v500 = vadd.f32 %v498, %v499
      %v501 = vrot.slane %v500, 1
      %v502 = vadd.f32 %v500, %v501
      %v503 = vmul.f32 %v387, %v387
      %v504 = vmul.f32 %v389, %v389
      %v505 = vmul.f32 %v392, %v392
      %v506 = vmul.f32 %v394, %v394
      %v507 = vmul.f32 %v397, %v397
      %v508 = vmul.f32 %v399, %v399
      %v509 = vmul.f32 %v402, %v402
      %v510 = vmul.f32 %v404, %v404
      %v511 = vmul.f32 %v407, %v407
      %v512 = vmul.f32 %v409, %v409
      %v513 = vmul.f32 %v412, %v412
      %v514 = vmul.f32 %v414, %v414
      %v515 = vmul.f32 %v417, %v417
      %v516 = vmul.f32 %v419, %v419
      %v517 = vmul.f32 %v422, %v422
      %v518 = vmul.f32 %v424, %v424
      %v519 = vmul.f32 %v427, %v427
      %v520 = vmul.f32 %v429, %v429
      %v521 = vmul.f32 %v432, %v432
      %v522 = vmul.f32 %v434, %v434
      %v523 = vmul.f32 %v437, %v437
      %v524 = vmul.f32 %v439, %v439
      %v525 = vmul.f32 %v442, %v442
      %v526 = vmul.f32 %v444, %v444
      %v527 = vmul.f32 %v447, %v447
      %v528 = vmul.f32 %v449, %v449
      %v529 = vmul.f32 %v452, %v452
      %v530 = vmul.f32 %v454, %v454
      %v531 = vmul.f32 %v457, %v457
      %v532 = vmul.f32 %v459, %v459
      %v533 = vmul.f32 %v462, %v462
      %v534 = vmul.f32 %v464, %v464
      %v535 = vadd.f32 %v503, %v504
      %v536 = vadd.f32 %v535, %v505
      %v537 = vadd.f32 %v536, %v506
      %v538 = vadd.f32 %v537, %v507
      %v539 = vadd.f32 %v538, %v508
      %v540 = vadd.f32 %v539, %v509
      %v541 = vadd.f32 %v540, %v510
      %v542 = vadd.f32 %v541, %v511
      %v543 = vadd.f32 %v542, %v512
      %v544 = vadd.f32 %v543, %v513
      %v545 = vadd.f32 %v544, %v514
      %v546 = vadd.f32 %v545, %v515
      %v547 = vadd.f32 %v546, %v516
      %v548 = vadd.f32 %v547, %v517
      %v549 = vadd.f32 %v548, %v518
      %v550 = vadd.f32 %v549, %v519
      %v551 = vadd.f32 %v550, %v520
      %v552 = vadd.f32 %v551, %v521
      %v553 = vadd.f32 %v552, %v522
      %v554 = vadd.f32 %v553, %v523
      %v555 = vadd.f32 %v554, %v524
      %v556 = vadd.f32 %v555, %v525
      %v557 = vadd.f32 %v556, %v526
      %v558 = vadd.f32 %v557, %v527
      %v559 = vadd.f32 %v558, %v528
      %v560 = vadd.f32 %v559, %v529
      %v561 = vadd.f32 %v560, %v530
      %v562 = vadd.f32 %v561, %v531
      %v563 = vadd.f32 %v562, %v532
      %v564 = vadd.f32 %v563, %v533
      %v565 = vadd.f32 %v564, %v534
      %v566 = vrot.slane %v565, 4
      %v567 = vadd.f32 %v565, %v566
      %v568 = vrot.slane %v567, 2
      %v569 = vadd.f32 %v567, %v568
      %v570 = vrot.slane %v569, 1
      %v571 = vadd.f32 %v569, %v570
      %572 = vst [vmem:[%s184] sm:$0x1] %v502
      %573 = vst [vmem:[%s184 + $0x1] sm:$0x1] %v571
      %v574 = vpack.c.bf16 %v387, %v387
      %v575 = vpack.c.bf16 %v389, %v389
      %v576 = vpack.c.bf16 %v392, %v392
      %v577 = vpack.c.bf16 %v394, %v394
      %v578 = vpack.c.bf16 %v397, %v397
      %v579 = vpack.c.bf16 %v399, %v399
      %v580 = vpack.c.bf16 %v402, %v402
      %v581 = vpack.c.bf16 %v404, %v404
      %v582 = vpack.c.bf16 %v407, %v407
      %v583 = vpack.c.bf16 %v409, %v409
      %v584 = vpack.c.bf16 %v412, %v412
      %v585 = vpack.c.bf16 %v414, %v414
      %v586 = vpack.c.bf16 %v417, %v417
      %v587 = vpack.c.bf16 %v419, %v419
      %v588 = vpack.c.bf16 %v422, %v422
      %v589 = vpack.c.bf16 %v424, %v424
      %v590 = vpack.c.bf16 %v427, %v427
      %v591 = vpack.c.bf16 %v429, %v429
      %v592 = vpack.c.bf16 %v432, %v432
      %v593 = vpack.c.bf16 %v434, %v434
      %v594 = vpack.c.bf16 %v437, %v437
      %v595 = vpack.c.bf16 %v439, %v439
      %v596 = vpack.c.bf16 %v442, %v442
      %v597 = vpack.c.bf16 %v444, %v444
      %v598 = vpack.c.bf16 %v447, %v447
      %v599 = vpack.c.bf16 %v449, %v449
      %v600 = vpack.c.bf16 %v452, %v452
      %v601 = vpack.c.bf16 %v454, %v454
      %v602 = vpack.c.bf16 %v457, %v457
      %v603 = vpack.c.bf16 %v459, %v459
      %v604 = vpack.c.bf16 %v462, %v462
      %v605 = vpack.c.bf16 %v464, %v464
      %606 = vst [vmem:[%s179] sm:$0xf] %v574
      %607 = vst [vmem:[%s179 + $0x4] sm:$0xf] %v575
      %608 = vst [vmem:[%s179 + $0x8] sm:$0xf] %v576
      %609 = vst [vmem:[%s179 + $0xc] sm:$0xf] %v577
      %610 = vst [vmem:[%s179 + $0x10] sm:$0xf] %v578
      %611 = vst [vmem:[%s179 + $0x14] sm:$0xf] %v579
      %612 = vst [vmem:[%s179 + $0x18] sm:$0xf] %v580
      %613 = vst [vmem:[%s179 + $0x1c] sm:$0xf] %v581
      %614 = vst [vmem:[%s179 + $0x20] sm:$0xf] %v582
      %615 = vst [vmem:[%s179 + $0x24] sm:$0xf] %v583
      %616 = vst [vmem:[%s179 + $0x28] sm:$0xf] %v584
      %617 = vst [vmem:[%s179 + $0x2c] sm:$0xf] %v585
      %618 = vst [vmem:[%s179 + $0x30] sm:$0xf] %v586
      %619 = vst [vmem:[%s179 + $0x34] sm:$0xf] %v587
      %620 = vst [vmem:[%s179 + $0x38] sm:$0xf] %v588
      %621 = vst [vmem:[%s179 + $0x3c] sm:$0xf] %v589
      %622 = vst [vmem:[%s179 + $0x40] sm:$0xf] %v590
      %623 = vst [vmem:[%s179 + $0x44] sm:$0xf] %v591
      %624 = vst [vmem:[%s179 + $0x48] sm:$0xf] %v592
      %625 = vst [vmem:[%s179 + $0x4c] sm:$0xf] %v593
      %626 = vst [vmem:[%s179 + $0x50] sm:$0xf] %v594
      %627 = vst [vmem:[%s179 + $0x54] sm:$0xf] %v595
      %628 = vst [vmem:[%s179 + $0x58] sm:$0xf] %v596
      %629 = vst [vmem:[%s179 + $0x5c] sm:$0xf] %v597
      %630 = vst [vmem:[%s179 + $0x60] sm:$0xf] %v598
      %631 = vst [vmem:[%s179 + $0x64] sm:$0xf] %v599
      %632 = vst [vmem:[%s179 + $0x68] sm:$0xf] %v600
      %633 = vst [vmem:[%s179 + $0x6c] sm:$0xf] %v601
      %634 = vst [vmem:[%s179 + $0x70] sm:$0xf] %v602
      %635 = vst [vmem:[%s179 + $0x74] sm:$0xf] %v603
      %636 = vst [vmem:[%s179 + $0x78] sm:$0xf] %v604
      %637 = vst [vmem:[%s179 + $0x7c] sm:$0xf] %v605
      %s638 = smul.u32 32, %s15
      %p639 = scmp.lt.s32.totalorder %s638, 63
      %s640 = scalar_select %p639, %s638, 63
      %s641 = smul.addr %s640, 4
      %s642 = scalar_lea.vmem %s2, %s641
      %p643 = scmp.lt.s32.totalorder %s15, 1
      %s644 = scalar_select %p643, %s15, 1
      %s645 = smul.addr %s644, 2
      %s646 = scalar_lea.vmem %s3, %s645
      // Predicated region
      $region29: #{basic_block_forward.5} parent=27 // pred_check
        %p647 = pneg %p80
      $region30: #{basic_block_forward.5} parent=27 // pred_check_branch
        %649 = sbr.rel (%p647) target = $region32
      $region31: #{basic_block_forward.5} parent=27 // pred_region
        %s650 = smul.u32 32, %s15
      $region32: #{basic_block_forward.5} parent=27 // pred_fallthru
        _
      // Predicated region
      $region33: #{basic_block_forward.5} parent=27 // pred_check
        %p651 = pneg %p106
      $region34: #{basic_block_forward.5} parent=27 // pred_check_branch
        %653 = sbr.rel (%p651) target = $region36
      $region35: #{basic_block_forward.5} parent=27 // pred_region
        _
      $region36: #{basic_block_forward.5} parent=27 // pred_fallthru
        _
    $region28: #{basic_block_forward.5} parent=5 // pred_fallthru
      _
    %p654 = scmp.le.s32.totalorder 2, %s10
    // Predicated region
    $region37: #{basic_block_forward.5} parent=5 // pred_check
      %p655 = pneg %p654
    $region38: #{basic_block_forward.5} parent=5 // pred_check_branch
      %657 = sbr.rel (%p655) target = $region40
    $region39: #{basic_block_forward.5} parent=5 // pred_region
      %s658 = ssub.s32 %s10, 2
      // Predicated region
      $region41: #{basic_block_forward.5} parent=39 // pred_check
        %p659 = pneg %p86
      $region42: #{basic_block_forward.5} parent=39 // pred_check_branch
        %661 = sbr.rel (%p659) target = $region44
      $region43: #{basic_block_forward.5} parent=39 // pred_region
        %s662 = smul.u32 32, %s16
        %p663 = scmp.lt.s32.totalorder %s662, 63
        %s664 = scalar_select %p663, %s662, 63
        %s665 = smul.addr %s664, 4
        %s666 = scalar_lea.vmem %s2, %s665
      $region44: #{basic_block_forward.5} parent=39 // pred_fallthru
        _
      // Predicated region
      $region45: #{basic_block_forward.5} parent=39 // pred_check
        %p667 = pneg %p112
      $region46: #{basic_block_forward.5} parent=39 // pred_check_branch
        %669 = sbr.rel (%p667) target = $region48
      $region47: #{basic_block_forward.5} parent=39 // pred_region
        %p670 = scmp.lt.s32.totalorder %s16, 1
        %s671 = scalar_select %p670, %s16, 1
        %s672 = smul.addr %s671, 2
        %s673 = scalar_lea.vmem %s3, %s672
      $region48: #{basic_block_forward.5} parent=39 // pred_fallthru
        _
    $region40: #{basic_block_forward.5} parent=5 // pred_fallthru
      _
  $region6: #{basic_block_forward.5} parent=0 // loop_footer
    %s14 = sadd.s32 1, %s10
  $region7: #{basic_block_forward.5} parent=0 // loop_footer_branch
    %9 = sbr.rel target = $region3
  $region8: #{basic_block_forward.5} parent=0 // loop_exit
    _

// kernel: basic_block_forward.9
$region0: #{basic_block_forward.9}
  #allocation0 [shape = 'u32[]', space=smem, size = 0x4, offset = 0x4, fixed_abs, tag = 'smem constant byte address 0x4 - core index']
  #allocation1 [shape = 'u32[72,128]{1,0:T(1,128)}', space=vmem, size = 0x9000, scoped, tag = 'internal scratch']
  %s0 = inlined_call_operand.vmem [shape: bf16[512,128], index: 0, kind: input, shape index: {}]
  %s1 = inlined_call_operand.vmem [shape: f32[1,128], index: 1, kind: input, shape index: {}]
  %s2 = inlined_call_operand.vmem [shape: f32[1,128], index: 2, kind: input, shape index: {}]
  %s3 = inlined_call_operand.vmem [shape: bf16[512,128], index: 3, kind: input, shape index: {}]
  %s4 = inlined_call_operand.vmem [shape: f32[1,128], index: 4, kind: input, shape index: {}]
  %s5 = inlined_call_operand.vmem [shape: f32[1,128], index: 5, kind: input, shape index: {}]
  %s6 = inlined_call_operand.vmem [shape: f32[512,128], index: 6, kind: output, shape index: {}]
  %s7 = sld [smem:[#allocation0]]
  $region57: #{basic_block_forward.9} parent=0
    _
  %s9 = ssub.s32 1, %s7
  %s10 = scalar_select 0, %s9, %s7
  loop: start=0, step=1, limit=4
  $region2: #{basic_block_forward.9} parent=0 // loop_pre_header
    _
  $region3: #{basic_block_forward.9} parent=0 // loop_header
    %s12 = sphi 0, %s16
    %p13 = scmp.ge.s32.totalorder %s12, 4
    %s22 = sphi 0, %s24
    %s25 = sphi 0, %s22
    %s26 = sphi 0, %s25
    %s42 = sphi 0, %s26
    %s46 = sphi 0, %s46
    %s48 = sphi 0, %s46
    %s49 = sphi 0, %s48
    %s63 = sphi 0, %s49
    %s67 = sphi 0, %s67
    %s69 = sphi 0, %s67
    %s70 = sphi 0, %s69
    %s84 = sphi 0, %s70
    %s90 = sphi 0, %s92
    %s93 = sphi 0, %s90
    %s94 = sphi 0, %s93
    %s110 = sphi 0, %s94
    %s114 = sphi 0, %s114
    %s116 = sphi 0, %s114
    %s117 = sphi 0, %s116
    %s131 = sphi 0, %s117
    %s135 = sphi 0, %s135
    %s137 = sphi 0, %s135
    %s138 = sphi 0, %s137
    %s152 = sphi 0, %s138
    %s158 = sphi 0, %s160
    %s161 = sphi 0, %s158
    %s162 = sphi 0, %s161
    %s178 = sphi 0, %s162
  $region4: #{basic_block_forward.9} parent=0 // loop_header_branch
    %15 = sbr.rel (%p13) target = $region8
  $region5: #{basic_block_forward.9} parent=0 // loop_body
    %s17 = ssub.s32 %s12, 1
    %s18 = ssub.s32 %s12, 2
    %s19 = sadd.s32 %s12, 1
    %s20 = ssub.s32 %s12, %s19
    %p21 = scmp.eq.s32.totalorder %s20, 0
    %s23 = sadd.s32 %s22, 1
    %s24 = scalar_select %p21, %s22, %s23
    %p27 = pneg %p21
    %p28 = scmp.eq.s32.totalorder %s12, 1
    %p29 = por %p27, %p28
    %p30 = scmp.ne.s32.totalorder %s22, %s25
    %p31 = scmp.eq.s32.totalorder %s12, 0
    %p32 = por %p30, %p31
    %p33 = scmp.ne.s32.totalorder %s22, %s25
    %p34 = scmp.eq.s32.totalorder %s17, 1
    %p35 = por %p33, %p34
    %p36 = scmp.ne.s32.totalorder %s25, %s26
    %p37 = scmp.eq.s32.totalorder %s17, 0
    %p38 = por %p36, %p37
    %p39 = scmp.ne.s32.totalorder %s25, %s26
    %p40 = scmp.eq.s32.totalorder %s18, 1
    %p41 = por %p39, %p40
    %p43 = scmp.ne.s32.totalorder %s26, %s42
    %p44 = scmp.eq.s32.totalorder %s18, 0
    %p45 = por %p43, %p44
    %s47 = sadd.s32 %s46, 1
    %p50 = scmp.eq.s32.totalorder %s12, 1
    %p51 = scmp.ne.s32.totalorder %s46, %s48
    %p52 = scmp.eq.s32.totalorder %s12, 0
    %p53 = por %p51, %p52
    %p54 = scmp.ne.s32.totalorder %s46, %s48
    %p55 = scmp.eq.s32.totalorder %s17, 1
    %p56 = por %p54, %p55
    %p57 = scmp.ne.s32.totalorder %s48, %s49
    %p58 = scmp.eq.s32.totalorder %s17, 0
    %p59 = por %p57, %p58
    %p60 = scmp.ne.s32.totalorder %s48, %s49
    %p61 = scmp.eq.s32.totalorder %s18, 1
    %p62 = por %p60, %p61
    %p64 = scmp.ne.s32.totalorder %s49, %s63
    %p65 = scmp.eq.s32.totalorder %s18, 0
    %p66 = por %p64, %p65
    %s68 = sadd.s32 %s67, 1
    %p71 = scmp.eq.s32.totalorder %s12, 1
    %p72 = scmp.ne.s32.totalorder %s67, %s69
    %p73 = scmp.eq.s32.totalorder %s12, 0
    %p74 = por %p72, %p73
    %p75 = scmp.ne.s32.totalorder %s67, %s69
    %p76 = scmp.eq.s32.totalorder %s17, 1
    %p77 = por %p75, %p76
    %p78 = scmp.ne.s32.totalorder %s69, %s70
    %p79 = scmp.eq.s32.totalorder %s17, 0
    %p80 = por %p78, %p79
    %p81 = scmp.ne.s32.totalorder %s69, %s70
    %p82 = scmp.eq.s32.totalorder %s18, 1
    %p83 = por %p81, %p82
    %p85 = scmp.ne.s32.totalorder %s70, %s84
    %p86 = scmp.eq.s32.totalorder %s18, 0
    %p87 = por %p85, %p86
    %s88 = ssub.s32 %s12, %s19
    %p89 = scmp.eq.s32.totalorder %s88, 0
    %s91 = sadd.s32 %s90, 1
    %s92 = scalar_select %p89, %s90, %s91
    %p95 = pneg %p89
    %p96 = scmp.eq.s32.totalorder %s12, 1
    %p97 = por %p95, %p96
    %p98 = scmp.ne.s32.totalorder %s90, %s93
    %p99 = scmp.eq.s32.totalorder %s12, 0
    %p100 = por %p98, %p99
    %p101 = scmp.ne.s32.totalorder %s90, %s93
    %p102 = scmp.eq.s32.totalorder %s17, 1
    %p103 = por %p101, %p102
    %p104 = scmp.ne.s32.totalorder %s93, %s94
    %p105 = scmp.eq.s32.totalorder %s17, 0
    %p106 = por %p104, %p105
    %p107 = scmp.ne.s32.totalorder %s93, %s94
    %p108 = scmp.eq.s32.totalorder %s18, 1
    %p109 = por %p107, %p108
    %p111 = scmp.ne.s32.totalorder %s94, %s110
    %p112 = scmp.eq.s32.totalorder %s18, 0
    %p113 = por %p111, %p112
    %s115 = sadd.s32 %s114, 1
    %p118 = scmp.eq.s32.totalorder %s12, 1
    %p119 = scmp.ne.s32.totalorder %s114, %s116
    %p120 = scmp.eq.s32.totalorder %s12, 0
    %p121 = por %p119, %p120
    %p122 = scmp.ne.s32.totalorder %s114, %s116
    %p123 = scmp.eq.s32.totalorder %s17, 1
    %p124 = por %p122, %p123
    %p125 = scmp.ne.s32.totalorder %s116, %s117
    %p126 = scmp.eq.s32.totalorder %s17, 0
    %p127 = por %p125, %p126
    %p128 = scmp.ne.s32.totalorder %s116, %s117
    %p129 = scmp.eq.s32.totalorder %s18, 1
    %p130 = por %p128, %p129
    %p132 = scmp.ne.s32.totalorder %s117, %s131
    %p133 = scmp.eq.s32.totalorder %s18, 0
    %p134 = por %p132, %p133
    %s136 = sadd.s32 %s135, 1
    %p139 = scmp.eq.s32.totalorder %s12, 1
    %p140 = scmp.ne.s32.totalorder %s135, %s137
    %p141 = scmp.eq.s32.totalorder %s12, 0
    %p142 = por %p140, %p141
    %p143 = scmp.ne.s32.totalorder %s135, %s137
    %p144 = scmp.eq.s32.totalorder %s17, 1
    %p145 = por %p143, %p144
    %p146 = scmp.ne.s32.totalorder %s137, %s138
    %p147 = scmp.eq.s32.totalorder %s17, 0
    %p148 = por %p146, %p147
    %p149 = scmp.ne.s32.totalorder %s137, %s138
    %p150 = scmp.eq.s32.totalorder %s18, 1
    %p151 = por %p149, %p150
    %p153 = scmp.ne.s32.totalorder %s138, %s152
    %p154 = scmp.eq.s32.totalorder %s18, 0
    %p155 = por %p153, %p154
    %s156 = ssub.s32 %s12, %s19
    %p157 = scmp.eq.s32.totalorder %s156, 0
    %s159 = sadd.s32 %s158, 1
    %s160 = scalar_select %p157, %s158, %s159
    %p163 = pneg %p157
    %p164 = scmp.eq.s32.totalorder %s12, 1
    %p165 = por %p163, %p164
    %p166 = scmp.ne.s32.totalorder %s158, %s161
    %p167 = scmp.eq.s32.totalorder %s12, 0
    %p168 = por %p166, %p167
    %p169 = scmp.ne.s32.totalorder %s158, %s161
    %p170 = scmp.eq.s32.totalorder %s17, 1
    %p171 = por %p169, %p170
    %p172 = scmp.ne.s32.totalorder %s161, %s162
    %p173 = scmp.eq.s32.totalorder %s17, 0
    %p174 = por %p172, %p173
    %p175 = scmp.ne.s32.totalorder %s161, %s162
    %p176 = scmp.eq.s32.totalorder %s18, 1
    %p177 = por %p175, %p176
    %p179 = scmp.ne.s32.totalorder %s162, %s178
    %p180 = scmp.eq.s32.totalorder %s18, 0
    %p181 = por %p179, %p180
    %p182 = scmp.le.s32.totalorder 1, %s12
    %p183 = scmp.lt.s32.totalorder %s12, 3
    %p184 = pnand %p182, %p183
    %p185 = pneg %p184
    // Predicated region
    $region9: #{basic_block_forward.9} parent=5 // pred_check
      _
    $region10: #{basic_block_forward.9} parent=5 // pred_check_branch
      %187 = sbr.rel (%p184) target = $region12
    $region11: #{basic_block_forward.9} parent=5 // pred_region
      %s188 = ssub.s32 %s12, 1
      // Predicated region
      $region13: #{basic_block_forward.9} parent=11 // pred_check
        %p189 = pneg %p59
      $region14: #{basic_block_forward.9} parent=11 // pred_check_branch
        %191 = sbr.rel (%p189) target = $region16
      $region15: #{basic_block_forward.9} parent=11 // pred_region
        _
      $region16: #{basic_block_forward.9} parent=11 // pred_fallthru
        _
      // Predicated region
      $region17: #{basic_block_forward.9} parent=11 // pred_check
        %p192 = pneg %p80
      $region18: #{basic_block_forward.9} parent=11 // pred_check_branch
        %194 = sbr.rel (%p192) target = $region20
      $region19: #{basic_block_forward.9} parent=11 // pred_region
        _
      $region20: #{basic_block_forward.9} parent=11 // pred_fallthru
        _
      // Predicated region
      $region21: #{basic_block_forward.9} parent=11 // pred_check
        %p195 = pneg %p127
      $region22: #{basic_block_forward.9} parent=11 // pred_check_branch
        %197 = sbr.rel (%p195) target = $region24
      $region23: #{basic_block_forward.9} parent=11 // pred_region
        _
      $region24: #{basic_block_forward.9} parent=11 // pred_fallthru
        _
      // Predicated region
      $region25: #{basic_block_forward.9} parent=11 // pred_check
        %p198 = pneg %p148
      $region26: #{basic_block_forward.9} parent=11 // pred_check_branch
        %200 = sbr.rel (%p198) target = $region28
      $region27: #{basic_block_forward.9} parent=11 // pred_region
        _
      $region28: #{basic_block_forward.9} parent=11 // pred_fallthru
        _
    $region12: #{basic_block_forward.9} parent=5 // pred_fallthru
      _
    %p201 = scmp.lt.s32.totalorder %s12, 2
    // Predicated region
    $region29: #{basic_block_forward.9} parent=5 // pred_check
      %p202 = pneg %p201
    $region30: #{basic_block_forward.9} parent=5 // pred_check_branch
      %204 = sbr.rel (%p202) target = $region32
    $region31: #{basic_block_forward.9} parent=5 // pred_region
      // Predicated region
      $region33: #{basic_block_forward.9} parent=31 // pred_check
        %p205 = pneg %p32
      $region34: #{basic_block_forward.9} parent=31 // pred_check_branch
        %207 = sbr.rel (%p205) target = $region36
      $region35: #{basic_block_forward.9} parent=31 // pred_region
        %s208 = smul.u32 32, %s12
        %p209 = scmp.lt.s32.totalorder %s208, 63
        %s210 = scalar_select %p209, %s208, 63
        %s211 = smul.addr %s210, 4
        %s212 = scalar_lea.vmem %s0, %s211
        %s213 = smul.u32 32, %s12
      $region36: #{basic_block_forward.9} parent=31 // pred_fallthru
        _
      // Predicated region
      $region37: #{basic_block_forward.9} parent=31 // pred_check
        %p214 = pneg %p100
      $region38: #{basic_block_forward.9} parent=31 // pred_check_branch
        %216 = sbr.rel (%p214) target = $region40
      $region39: #{basic_block_forward.9} parent=31 // pred_region
        %s217 = smul.u32 32, %s12
        %p218 = scmp.lt.s32.totalorder %s217, 63
        %s219 = scalar_select %p218, %s217, 63
        %s220 = smul.addr %s219, 4
        %s221 = scalar_lea.vmem %s3, %s220
        %s222 = smul.u32 32, %s12
      $region40: #{basic_block_forward.9} parent=31 // pred_fallthru
        _
    $region32: #{basic_block_forward.9} parent=5 // pred_fallthru
      _
    %p223 = scmp.le.s32.totalorder 1, %s12
    %p224 = scmp.lt.s32.totalorder %s12, 3
    %p225 = pnand %p223, %p224
    %p226 = pneg %p225
    // Predicated region
    $region41: #{basic_block_forward.9} parent=5 // pred_check
      _
    $region42: #{basic_block_forward.9} parent=5 // pred_check_branch
      %228 = sbr.rel (%p225) target = $region44
    $region43: #{basic_block_forward.9} parent=5 // pred_region
      %s229 = ssub.s32 %s12, 1
      %s230 = smul.u32 32, %s17
      %p231 = scmp.lt.s32.totalorder %s230, 63
      %s232 = scalar_select %p231, %s230, 63
      %s233 = smul.addr %s232, 4
      %s234 = scalar_lea.vmem %s0, %s233
      %p235 = pneg %p38
      %p236 = pneg %p35
      %p237 = pneg %p59
      %p238 = pneg %p56
      %p239 = pneg %p80
      %p240 = pneg %p77
      %s241 = smul.u32 32, %s17
      %p242 = scmp.lt.s32.totalorder %s241, 63
      %s243 = scalar_select %p242, %s241, 63
      %s244 = smul.addr %s243, 4
      %s245 = scalar_lea.vmem %s3, %s244
      %p246 = pneg %p106
      %p247 = pneg %p103
      %p248 = pneg %p127
      %p249 = pneg %p124
      %p250 = pneg %p148
      %p251 = pneg %p145
      %p252 = pneg %p174
      %p253 = pneg %p171
      %s254 = smul.u32 32, %s17
      %p255 = scmp.lt.s32.totalorder %s254, 63
      %s256 = scalar_select %p255, %s254, 63
      %s257 = smul.addr %s256, 8
      %s258 = scalar_lea.vmem %s6, %s257
      %s259 = smul.u32 32, %s17
      %p260 = scmp.lt.s32.totalorder %s259, 63
      %s261 = scalar_select %p260, %s259, 63
      %s262 = smul.addr %s261, 4
      %s263 = scalar_lea.vmem %s0, %s262
      %s264 = smul.u32 32, %s17
      %s265 = smul.u32 32, %s17
      %p266 = scmp.lt.s32.totalorder %s265, 63
      %s267 = scalar_select %p266, %s265, 63
      %s268 = smul.addr %s267, 4
      %s269 = scalar_lea.vmem %s3, %s268
      %s270 = smul.u32 32, %s17
      %s271 = smul.u32 32, %s17
      %p272 = scmp.lt.s32.totalorder %s271, 63
      %s273 = scalar_select %p272, %s271, 63
      %s274 = smul.addr %s273, 8
      %s275 = scalar_lea.vmem %s6, %s274
      %s276 = smul.u32 32, %s17
      %v277 = vld [vmem:[%s263] sm:$0xf]
      %v278 = vld [vmem:[%s263 + $0x4] sm:$0xf]
      %v279 = vld [vmem:[%s263 + $0x8] sm:$0xf]
      %v280 = vld [vmem:[%s263 + $0xc] sm:$0xf]
      %v281 = vld [vmem:[%s263 + $0x10] sm:$0xf]
      %v282 = vld [vmem:[%s263 + $0x14] sm:$0xf]
      %v283 = vld [vmem:[%s263 + $0x18] sm:$0xf]
      %v284 = vld [vmem:[%s263 + $0x1c] sm:$0xf]
      %v285 = vld [vmem:[%s263 + $0x20] sm:$0xf]
      %v286 = vld [vmem:[%s263 + $0x24] sm:$0xf]
      %v287 = vld [vmem:[%s263 + $0x28] sm:$0xf]
      %v288 = vld [vmem:[%s263 + $0x2c] sm:$0xf]
      %v289 = vld [vmem:[%s263 + $0x30] sm:$0xf]
      %v290 = vld [vmem:[%s263 + $0x34] sm:$0xf]
      %v291 = vld [vmem:[%s263 + $0x38] sm:$0xf]
      %v292 = vld [vmem:[%s263 + $0x3c] sm:$0xf]
      %v293 = vld [vmem:[%s263 + $0x40] sm:$0xf]
      %v294 = vld [vmem:[%s263 + $0x44] sm:$0xf]
      %v295 = vld [vmem:[%s263 + $0x48] sm:$0xf]
      %v296 = vld [vmem:[%s263 + $0x4c] sm:$0xf]
      %v297 = vld [vmem:[%s263 + $0x50] sm:$0xf]
      %v298 = vld [vmem:[%s263 + $0x54] sm:$0xf]
      %v299 = vld [vmem:[%s263 + $0x58] sm:$0xf]
      %v300 = vld [vmem:[%s263 + $0x5c] sm:$0xf]
      %v301 = vld [vmem:[%s263 + $0x60] sm:$0xf]
      %v302 = vld [vmem:[%s263 + $0x64] sm:$0xf]
      %v303 = vld [vmem:[%s263 + $0x68] sm:$0xf]
      %v304 = vld [vmem:[%s263 + $0x6c] sm:$0xf]
      %v305 = vld [vmem:[%s263 + $0x70] sm:$0xf]
      %v306 = vld [vmem:[%s263 + $0x74] sm:$0xf]
      %v307 = vld [vmem:[%s263 + $0x78] sm:$0xf]
      %v308 = vld [vmem:[%s263 + $0x7c] sm:$0xf]
      %v309 = vunpack.c.l.bf16 %v277
      %v310 = vunpack.c.l.bf16 %v278
      %v311 = vunpack.c.l.bf16 %v279
      %v312 = vunpack.c.l.bf16 %v280
      %v313 = vunpack.c.l.bf16 %v281
      %v314 = vunpack.c.l.bf16 %v282
      %v315 = vunpack.c.l.bf16 %v283
      %v316 = vunpack.c.l.bf16 %v284
      %v317 = vunpack.c.l.bf16 %v285
      %v318 = vunpack.c.l.bf16 %v286
      %v319 = vunpack.c.l.bf16 %v287
      %v320 = vunpack.c.l.bf16 %v288
      %v321 = vunpack.c.l.bf16 %v289
      %v322 = vunpack.c.l.bf16 %v290
      %v323 = vunpack.c.l.bf16 %v291
      %v324 = vunpack.c.l.bf16 %v292
      %v325 = vunpack.c.l.bf16 %v293
      %v326 = vunpack.c.l.bf16 %v294
      %v327 = vunpack.c.l.bf16 %v295
      %v328 = vunpack.c.l.bf16 %v296
      %v329 = vunpack.c.l.bf16 %v297
      %v330 = vunpack.c.l.bf16 %v298
      %v331 = vunpack.c.l.bf16 %v299
      %v332 = vunpack.c.l.bf16 %v300
      %v333 = vunpack.c.l.bf16 %v301
      %v334 = vunpack.c.l.bf16 %v302
      %v335 = vunpack.c.l.bf16 %v303
      %v336 = vunpack.c.l.bf16 %v304
      %v337 = vunpack.c.l.bf16 %v305
      %v338 = vunpack.c.l.bf16 %v306
      %v339 = vunpack.c.l.bf16 %v307
      %v340 = vunpack.c.l.bf16 %v308
      %v341 = vld [vmem:[%s1] sm:$0x1]
      %v343 = vperm.slane %v341, 0
      %v345 = vmul.f32 %v309, %v343
      %v346 = vmul.f32 %v310, %v343
      %v347 = vmul.f32 %v311, %v343
      %v348 = vmul.f32 %v312, %v343
      %v349 = vmul.f32 %v313, %v343
      %v350 = vmul.f32 %v314, %v343
      %v351 = vmul.f32 %v315, %v343
      %v352 = vmul.f32 %v316, %v343
      %v353 = vmul.f32 %v317, %v343
      %v354 = vmul.f32 %v318, %v343
      %v355 = vmul.f32 %v319, %v343
      %v356 = vmul.f32 %v320, %v343
      %v357 = vmul.f32 %v321, %v343
      %v358 = vmul.f32 %v322, %v343
      %v359 = vmul.f32 %v323, %v343
      %v360 = vmul.f32 %v324, %v343
      %v361 = vmul.f32 %v325, %v343
      %v362 = vmul.f32 %v326, %v343
      %v363 = vmul.f32 %v327, %v343
      %v364 = vmul.f32 %v328, %v343
      %v365 = vmul.f32 %v329, %v343
      %v366 = vmul.f32 %v330, %v343
      %v367 = vmul.f32 %v331, %v343
      %v368 = vmul.f32 %v332, %v343
      %v369 = vmul.f32 %v333, %v343
      %v370 = vmul.f32 %v334, %v343
      %v371 = vmul.f32 %v335, %v343
      %v372 = vmul.f32 %v336, %v343
      %v373 = vmul.f32 %v337, %v343
      %v374 = vmul.f32 %v338, %v343
      %v375 = vmul.f32 %v339, %v343
      %v376 = vmul.f32 %v340, %v343
      %v377 = vld [vmem:[%s2] sm:$0x1]
      %v379 = vperm.slane %v377, 0
      %v381 = vadd.f32 %v345, %v379
      %v382 = vadd.f32 %v346, %v379
      %v383 = vadd.f32 %v347, %v379
      %v384 = vadd.f32 %v348, %v379
      %v385 = vadd.f32 %v349, %v379
      %v386 = vadd.f32 %v350, %v379
      %v387 = vadd.f32 %v351, %v379
      %v388 = vadd.f32 %v352, %v379
      %v389 = vadd.f32 %v353, %v379
      %v390 = vadd.f32 %v354, %v379
      %v391 = vadd.f32 %v355, %v379
      %v392 = vadd.f32 %v356, %v379
      %v393 = vadd.f32 %v357, %v379
      %v394 = vadd.f32 %v358, %v379
      %v395 = vadd.f32 %v359, %v379
      %v396 = vadd.f32 %v360, %v379
      %v397 = vadd.f32 %v361, %v379
      %v398 = vadd.f32 %v362, %v379
      %v399 = vadd.f32 %v363, %v379
      %v400 = vadd.f32 %v364, %v379
      %v401 = vadd.f32 %v365, %v379
      %v402 = vadd.f32 %v366, %v379
      %v403 = vadd.f32 %v367, %v379
      %v404 = vadd.f32 %v368, %v379
      %v405 = vadd.f32 %v369, %v379
      %v406 = vadd.f32 %v370, %v379
      %v407 = vadd.f32 %v371, %v379
      %v408 = vadd.f32 %v372, %v379
      %v409 = vadd.f32 %v373, %v379
      %v410 = vadd.f32 %v374, %v379
      %v411 = vadd.f32 %v375, %v379
      %v412 = vadd.f32 %v376, %v379
      %v413 = vld [vmem:[%s269] sm:$0xf]
      %v414 = vld [vmem:[%s269 + $0x4] sm:$0xf]
      %v415 = vld [vmem:[%s269 + $0x8] sm:$0xf]
      %v416 = vld [vmem:[%s269 + $0xc] sm:$0xf]
      %v417 = vld [vmem:[%s269 + $0x10] sm:$0xf]
      %v418 = vld [vmem:[%s269 + $0x14] sm:$0xf]
      %v419 = vld [vmem:[%s269 + $0x18] sm:$0xf]
      %v420 = vld [vmem:[%s269 + $0x1c] sm:$0xf]
      %v421 = vld [vmem:[%s269 + $0x20] sm:$0xf]
      %v422 = vld [vmem:[%s269 + $0x24] sm:$0xf]
      %v423 = vld [vmem:[%s269 + $0x28] sm:$0xf]
      %v424 = vld [vmem:[%s269 + $0x2c] sm:$0xf]
      %v425 = vld [vmem:[%s269 + $0x30] sm:$0xf]
      %v426 = vld [vmem:[%s269 + $0x34] sm:$0xf]
      %v427 = vld [vmem:[%s269 + $0x38] sm:$0xf]
      %v428 = vld [vmem:[%s269 + $0x3c] sm:$0xf]
      %v429 = vld [vmem:[%s269 + $0x40] sm:$0xf]
      %v430 = vld [vmem:[%s269 + $0x44] sm:$0xf]
      %v431 = vld [vmem:[%s269 + $0x48] sm:$0xf]
      %v432 = vld [vmem:[%s269 + $0x4c] sm:$0xf]
      %v433 = vld [vmem:[%s269 + $0x50] sm:$0xf]
      %v434 = vld [vmem:[%s269 + $0x54] sm:$0xf]
      %v435 = vld [vmem:[%s269 + $0x58] sm:$0xf]
      %v436 = vld [vmem:[%s269 + $0x5c] sm:$0xf]
      %v437 = vld [vmem:[%s269 + $0x60] sm:$0xf]
      %v438 = vld [vmem:[%s269 + $0x64] sm:$0xf]
      %v439 = vld [vmem:[%s269 + $0x68] sm:$0xf]
      %v440 = vld [vmem:[%s269 + $0x6c] sm:$0xf]
      %v441 = vld [vmem:[%s269 + $0x70] sm:$0xf]
      %v442 = vld [vmem:[%s269 + $0x74] sm:$0xf]
      %v443 = vld [vmem:[%s269 + $0x78] sm:$0xf]
      %v444 = vld [vmem:[%s269 + $0x7c] sm:$0xf]
      %v445 = vunpack.c.l.bf16 %v413
      %v446 = vunpack.c.l.bf16 %v414
      %v447 = vunpack.c.l.bf16 %v415
      %v448 = vunpack.c.l.bf16 %v416
      %v449 = vunpack.c.l.bf16 %v417
      %v450 = vunpack.c.l.bf16 %v418
      %v451 = vunpack.c.l.bf16 %v419
      %v452 = vunpack.c.l.bf16 %v420
      %v453 = vunpack.c.l.bf16 %v421
      %v454 = vunpack.c.l.bf16 %v422
      %v455 = vunpack.c.l.bf16 %v423
      %v456 = vunpack.c.l.bf16 %v424
      %v457 = vunpack.c.l.bf16 %v425
      %v458 = vunpack.c.l.bf16 %v426
      %v459 = vunpack.c.l.bf16 %v427
      %v460 = vunpack.c.l.bf16 %v428
      %v461 = vunpack.c.l.bf16 %v429
      %v462 = vunpack.c.l.bf16 %v430
      %v463 = vunpack.c.l.bf16 %v431
      %v464 = vunpack.c.l.bf16 %v432
      %v465 = vunpack.c.l.bf16 %v433
      %v466 = vunpack.c.l.bf16 %v434
      %v467 = vunpack.c.l.bf16 %v435
      %v468 = vunpack.c.l.bf16 %v436
      %v469 = vunpack.c.l.bf16 %v437
      %v470 = vunpack.c.l.bf16 %v438
      %v471 = vunpack.c.l.bf16 %v439
      %v472 = vunpack.c.l.bf16 %v440
      %v473 = vunpack.c.l.bf16 %v441
      %v474 = vunpack.c.l.bf16 %v442
      %v475 = vunpack.c.l.bf16 %v443
      %v476 = vunpack.c.l.bf16 %v444
      %v477 = vld [vmem:[%s4] sm:$0x1]
      %v479 = vperm.slane %v477, 0
      %v481 = vmul.f32 %v445, %v479
      %v482 = vmul.f32 %v446, %v479
      %v483 = vmul.f32 %v447, %v479
      %v484 = vmul.f32 %v448, %v479
      %v485 = vmul.f32 %v449, %v479
      %v486 = vmul.f32 %v450, %v479
      %v487 = vmul.f32 %v451, %v479
      %v488 = vmul.f32 %v452, %v479
      %v489 = vmul.f32 %v453, %v479
      %v490 = vmul.f32 %v454, %v479
      %v491 = vmul.f32 %v455, %v479
      %v492 = vmul.f32 %v456, %v479
      %v493 = vmul.f32 %v457, %v479
      %v494 = vmul.f32 %v458, %v479
      %v495 = vmul.f32 %v459, %v479
      %v496 = vmul.f32 %v460, %v479
      %v497 = vmul.f32 %v461, %v479
      %v498 = vmul.f32 %v462, %v479
      %v499 = vmul.f32 %v463, %v479
      %v500 = vmul.f32 %v464, %v479
      %v501 = vmul.f32 %v465, %v479
      %v502 = vmul.f32 %v466, %v479
      %v503 = vmul.f32 %v467, %v479
      %v504 = vmul.f32 %v468, %v479
      %v505 = vmul.f32 %v469, %v479
      %v506 = vmul.f32 %v470, %v479
      %v507 = vmul.f32 %v471, %v479
      %v508 = vmul.f32 %v472, %v479
      %v509 = vmul.f32 %v473, %v479
      %v510 = vmul.f32 %v474, %v479
      %v511 = vmul.f32 %v475, %v479
      %v512 = vmul.f32 %v476, %v479
      %v513 = vadd.f32 %v381, %v481
      %v514 = vadd.f32 %v382, %v482
      %v515 = vadd.f32 %v383, %v483
      %v516 = vadd.f32 %v384, %v484
      %v517 = vadd.f32 %v385, %v485
      %v518 = vadd.f32 %v386, %v486
      %v519 = vadd.f32 %v387, %v487
      %v520 = vadd.f32 %v388, %v488
      %v521 = vadd.f32 %v389, %v489
      %v522 = vadd.f32 %v390, %v490
      %v523 = vadd.f32 %v391, %v491
      %v524 = vadd.f32 %v392, %v492
      %v525 = vadd.f32 %v393, %v493
      %v526 = vadd.f32 %v394, %v494
      %v527 = vadd.f32 %v395, %v495
      %v528 = vadd.f32 %v396, %v496
      %v529 = vadd.f32 %v397, %v497
      %v530 = vadd.f32 %v398, %v498
      %v531 = vadd.f32 %v399, %v499
      %v532 = vadd.f32 %v400, %v500
      %v533 = vadd.f32 %v401, %v501
      %v534 = vadd.f32 %v402, %v502
      %v535 = vadd.f32 %v403, %v503
      %v536 = vadd.f32 %v404, %v504
      %v537 = vadd.f32 %v405, %v505
      %v538 = vadd.f32 %v406, %v506
      %v539 = vadd.f32 %v407, %v507
      %v540 = vadd.f32 %v408, %v508
      %v541 = vadd.f32 %v409, %v509
      %v542 = vadd.f32 %v410, %v510
      %v543 = vadd.f32 %v411, %v511
      %v544 = vadd.f32 %v412, %v512
      %v545 = vld [vmem:[%s5] sm:$0x1]
      %v547 = vperm.slane %v545, 0
      %v549 = vadd.f32 %v513, %v547
      %v550 = vadd.f32 %v514, %v547
      %v551 = vadd.f32 %v515, %v547
      %v552 = vadd.f32 %v516, %v547
      %v553 = vadd.f32 %v517, %v547
      %v554 = vadd.f32 %v518, %v547
      %v555 = vadd.f32 %v519, %v547
      %v556 = vadd.f32 %v520, %v547
      %v557 = vadd.f32 %v521, %v547
      %v558 = vadd.f32 %v522, %v547
      %v559 = vadd.f32 %v523, %v547
      %v560 = vadd.f32 %v524, %v547
      %v561 = vadd.f32 %v525, %v547
      %v562 = vadd.f32 %v526, %v547
      %v563 = vadd.f32 %v527, %v547
      %v564 = vadd.f32 %v528, %v547
      %v565 = vadd.f32 %v529, %v547
      %v566 = vadd.f32 %v530, %v547
      %v567 = vadd.f32 %v531, %v547
      %v568 = vadd.f32 %v532, %v547
      %v569 = vadd.f32 %v533, %v547
      %v570 = vadd.f32 %v534, %v547
      %v571 = vadd.f32 %v535, %v547
      %v572 = vadd.f32 %v536, %v547
      %v573 = vadd.f32 %v537, %v547
      %v574 = vadd.f32 %v538, %v547
      %v575 = vadd.f32 %v539, %v547
      %v576 = vadd.f32 %v540, %v547
      %v577 = vadd.f32 %v541, %v547
      %v578 = vadd.f32 %v542, %v547
      %v579 = vadd.f32 %v543, %v547
      %v580 = vadd.f32 %v544, %v547
      %v581 = vmax.f32 %v549, 0.0
      %v582 = vmax.f32 %v550, 0.0
      %v583 = vmax.f32 %v551, 0.0
      %v584 = vmax.f32 %v552, 0.0
      %v585 = vmax.f32 %v553, 0.0
      %v586 = vmax.f32 %v554, 0.0
      %v587 = vmax.f32 %v555, 0.0
      %v588 = vmax.f32 %v556, 0.0
      %v589 = vmax.f32 %v557, 0.0
      %v590 = vmax.f32 %v558, 0.0
      %v591 = vmax.f32 %v559, 0.0
      %v592 = vmax.f32 %v560, 0.0
      %v593 = vmax.f32 %v561, 0.0
      %v594 = vmax.f32 %v562, 0.0
      %v595 = vmax.f32 %v563, 0.0
      %v596 = vmax.f32 %v564, 0.0
      %v597 = vmax.f32 %v565, 0.0
      %v598 = vmax.f32 %v566, 0.0
      %v599 = vmax.f32 %v567, 0.0
      %v600 = vmax.f32 %v568, 0.0
      %v601 = vmax.f32 %v569, 0.0
      %v602 = vmax.f32 %v570, 0.0
      %v603 = vmax.f32 %v571, 0.0
      %v604 = vmax.f32 %v572, 0.0
      %v605 = vmax.f32 %v573, 0.0
      %v606 = vmax.f32 %v574, 0.0
      %v607 = vmax.f32 %v575, 0.0
      %v608 = vmax.f32 %v576, 0.0
      %v609 = vmax.f32 %v577, 0.0
      %v610 = vmax.f32 %v578, 0.0
      %v611 = vmax.f32 %v579, 0.0
      %v612 = vmax.f32 %v580, 0.0
      %613 = vst [vmem:[%s275] sm:$0xff] %v581
      %614 = vst [vmem:[%s275 + $0x8] sm:$0xff] %v582
      %615 = vst [vmem:[%s275 + $0x10] sm:$0xff] %v583
      %616 = vst [vmem:[%s275 + $0x18] sm:$0xff] %v584
      %617 = vst [vmem:[%s275 + $0x20] sm:$0xff] %v585
      %618 = vst [vmem:[%s275 + $0x28] sm:$0xff] %v586
      %619 = vst [vmem:[%s275 + $0x30] sm:$0xff] %v587
      %620 = vst [vmem:[%s275 + $0x38] sm:$0xff] %v588
      %621 = vst [vmem:[%s275 + $0x40] sm:$0xff] %v589
      %622 = vst [vmem:[%s275 + $0x48] sm:$0xff] %v590
      %623 = vst [vmem:[%s275 + $0x50] sm:$0xff] %v591
      %624 = vst [vmem:[%s275 + $0x58] sm:$0xff] %v592
      %625 = vst [vmem:[%s275 + $0x60] sm:$0xff] %v593
      %626 = vst [vmem:[%s275 + $0x68] sm:$0xff] %v594
      %627 = vst [vmem:[%s275 + $0x70] sm:$0xff] %v595
      %628 = vst [vmem:[%s275 + $0x78] sm:$0xff] %v596
      %629 = vst [vmem:[%s275 + $0x80] sm:$0xff] %v597
      %630 = vst [vmem:[%s275 + $0x88] sm:$0xff] %v598
      %631 = vst [vmem:[%s275 + $0x90] sm:$0xff] %v599
      %632 = vst [vmem:[%s275 + $0x98] sm:$0xff] %v600
      %633 = vst [vmem:[%s275 + $0xa0] sm:$0xff] %v601
      %634 = vst [vmem:[%s275 + $0xa8] sm:$0xff] %v602
      %635 = vst [vmem:[%s275 + $0xb0] sm:$0xff] %v603
      %636 = vst [vmem:[%s275 + $0xb8] sm:$0xff] %v604
      %637 = vst [vmem:[%s275 + $0xc0] sm:$0xff] %v605
      %638 = vst [vmem:[%s275 + $0xc8] sm:$0xff] %v606
      %639 = vst [vmem:[%s275 + $0xd0] sm:$0xff] %v607
      %640 = vst [vmem:[%s275 + $0xd8] sm:$0xff] %v608
      %641 = vst [vmem:[%s275 + $0xe0] sm:$0xff] %v609
      %642 = vst [vmem:[%s275 + $0xe8] sm:$0xff] %v610
      %643 = vst [vmem:[%s275 + $0xf0] sm:$0xff] %v611
      %644 = vst [vmem:[%s275 + $0xf8] sm:$0xff] %v612
      %s645 = smul.u32 32, %s17
      %p646 = scmp.lt.s32.totalorder %s645, 63
      %s647 = scalar_select %p646, %s645, 63
      %s648 = smul.addr %s647, 8
      %s649 = scalar_lea.vmem %s6, %s648
      // Predicated region
      $region45: #{basic_block_forward.9} parent=43 // pred_check
        %p650 = pneg %p171
      $region46: #{basic_block_forward.9} parent=43 // pred_check_branch
        %652 = sbr.rel (%p650) target = $region48
      $region47: #{basic_block_forward.9} parent=43 // pred_region
        %s653 = smul.u32 32, %s17
      $region48: #{basic_block_forward.9} parent=43 // pred_fallthru
        _
    $region44: #{basic_block_forward.9} parent=5 // pred_fallthru
      _
    %p654 = scmp.le.s32.totalorder 2, %s12
    // Predicated region
    $region49: #{basic_block_forward.9} parent=5 // pred_check
      %p655 = pneg %p654
    $region50: #{basic_block_forward.9} parent=5 // pred_check_branch
      %657 = sbr.rel (%p655) target = $region52
    $region51: #{basic_block_forward.9} parent=5 // pred_region
      %s658 = ssub.s32 %s12, 2
      // Predicated region
      $region53: #{basic_block_forward.9} parent=51 // pred_check
        %p659 = pneg %p177
      $region54: #{basic_block_forward.9} parent=51 // pred_check_branch
        %661 = sbr.rel (%p659) target = $region56
      $region55: #{basic_block_forward.9} parent=51 // pred_region
        %s662 = smul.u32 32, %s18
        %p663 = scmp.lt.s32.totalorder %s662, 63
        %s664 = scalar_select %p663, %s662, 63
        %s665 = smul.addr %s664, 8
        %s666 = scalar_lea.vmem %s6, %s665
      $region56: #{basic_block_forward.9} parent=51 // pred_fallthru
        _
    $region52: #{basic_block_forward.9} parent=5 // pred_fallthru
      _
  $region6: #{basic_block_forward.9} parent=0 // loop_footer
    %s16 = sadd.s32 1, %s12
  $region7: #{basic_block_forward.9} parent=0 // loop_footer_branch
    %11 = sbr.rel target = $region3
  $region8: #{basic_block_forward.9} parent=0 // loop_exit
    _

</llo_original>
